<compile_context>
chip_gen: v5e
topology: v5e:2x2
jax: 0.10.0
libtpu: 0.0.40
codegen_flags: <defaults>
</compile_context>

<pallas_src>
import functools

import jax
import jax.numpy as jnp
from jax.experimental import pallas as pl
from jax.experimental.pallas import tpu as pltpu


def _round_up(x: int, m: int) -> int:
    return ((x + m - 1) // m) * m


def _vmem_limit_bytes() -> int:
    # v7x has only 64 MiB of VMEM per TensorCore; v5e/v6e have 128 MiB.
    cap = 64 * 1024 * 1024
    try:
        cap = int(getattr(pltpu.get_tpu_info(), "vmem_capacity_bytes", cap))
    except Exception:
        pass
    return min(cap * 3 // 4, 100 * 1024 * 1024)


def _supcon_kernel(*refs, inv_temp, neg_scale, n_valid, bm, bk, has_col_pad,
                   use_labels):
    if use_labels:
        lab_r_ref, lab_c_ref, a_ref, c_ref, out_ref, m_sc, l_sc, s_sc, p_sc = refs
    else:
        mask_ref, a_ref, c_ref, out_ref, m_sc, l_sc, s_sc, p_sc = refs

    i = pl.program_id(0)          # anchor row block   ("parallel")
    j = pl.program_id(1)          # contrast col block ("arbitrary" reduction)

    @pl.when(j == 0)
    def _init():
        m_sc[...] = jnp.full_like(m_sc, -jnp.inf)
        l_sc[...] = jnp.zeros_like(l_sc)
        s_sc[...] = jnp.zeros_like(s_sc)
        p_sc[...] = jnp.zeros_like(p_sc)

    # NT contraction on the MXU in the storage dtype (bf16 by default); the
    # 1/temperature scale is applied after the dot, in f32, over bm*bk entries.
    raw = jax.lax.dot_general(
        a_ref[...], c_ref[...],
        dimension_numbers=(((1,), (1,)), ((), ())),
        preferred_element_type=jnp.float32) * inv_temp              # [bm,bk] f32

    # Positive candidates (same label / user mask); diag & padding handled below.
    if use_labels:
        same = lab_r_ref[...] == lab_c_ref[...]                      # [bm,bk] bool
    else:
        same = mask_ref[...] != 0

    def _flush(blk_max, keep_exp, pos):
        """Merge one tile into the running per-row (m, l, s, p) statistics."""
        m_prev = m_sc[...]
        m_new = jnp.maximum(m_prev, blk_max)
        e = jnp.exp(raw - m_new)
        if keep_exp is not None:
            e = jnp.where(keep_exp, e, 0.0)
        l_sc[...] = l_sc[...] * jnp.exp(m_prev - m_new) + jnp.sum(
            e, axis=1, keepdims=True)
        m_sc[...] = m_new
        s_sc[...] += jnp.sum(jnp.where(pos, raw, 0.0), axis=1, keepdims=True)
        p_sc[...] += jnp.sum(jnp.where(pos, 1.0, 0.0), axis=1, keepdims=True)

    # A tile needs the (rare) masked path only if it intersects the diagonal or
    # (when N was padded) it is the last column block.  Scalar-unit predicate.
    row_lo = i * bm
    col_lo = j * bk
    on_diag = jnp.logical_and(row_lo < col_lo + bk, col_lo < row_lo + bm)
    if has_col_pad:
        needs_mask = jnp.logical_or(on_diag, j == pl.num_programs(1) - 1)
    else:
        needs_mask = on_diag

    @pl.when(jnp.logical_not(needs_mask))
    def _fast():
        # Interior tile: no diagonal, no padded columns -> no per-element masks.
        _flush(jnp.max(raw, axis=1, keepdims=True), None, same)

    @pl.when(needs_mask)
    def _masked():
        row_idx = row_lo + jax.lax.broadcasted_iota(jnp.int32, (bm, bk), 0)
        col_idx = col_lo + jax.lax.broadcasted_iota(jnp.int32, (bm, bk), 1)
        off_diag = row_idx != col_idx
        if has_col_pad:
            valid_col = col_idx < n_valid
            keep = jnp.logical_and(valid_col, off_diag)
            # Row max over valid columns (diag included, matching the torch
            # stabilizer; the max cancels exactly in the final log-prob).
            blk_max = jnp.max(jnp.where(valid_col, raw, -jnp.inf),
                              axis=1, keepdims=True)
        else:
            keep = off_diag
            blk_max = jnp.max(raw, axis=1, keepdims=True)
        _flush(blk_max, keep, jnp.logical_and(same, keep))

    @pl.when(j == pl.num_programs(1) - 1)
    def _finalize():
        # mean_j mask*log_prob = S/P - row_max - log(sum exp_logits)
        # (rows with zero positives give NaN: same hazard as the torch module;
        #  padded rows are sliced away in the wrapper.)
        inv_p = pl.reciprocal(p_sc[...], approx=False)
        mean_log_prob_pos = s_sc[...] * inv_p - m_sc[...] - jnp.log(l_sc[...])
        out_ref[...] = (neg_scale * mean_log_prob_pos).astype(out_ref.dtype)


def supcon_loss(features, labels=None, mask=None, *, temperature=0.07,
                contrast_mode='all', base_temperature=0.07,
                block_m=512, block_k=512, mxu_dtype=jnp.bfloat16):
    if features.ndim < 3:
        raise ValueError('`features` needs to be [bsz, n_views, ...]')
    if features.ndim > 3:
        features = features.reshape(features.shape[0], features.shape[1], -1)
    bsz, n_views, dim = features.shape

    if labels is not None and mask is not None:
        raise ValueError('Cannot define both `labels` and `mask`')
    if contrast_mode != 'all':
        # TODO(synk): contrast_mode='one' (anchor = features[:, 0]) not implemented.
        raise NotImplementedError("only contrast_mode='all' is implemented")

    use_labels = mask is None
    if use_labels and labels is None:
        labels = jnp.arange(bsz, dtype=jnp.int32)        # SimCLR: eye(bsz) mask
    elif use_labels:
        labels = jnp.asarray(labels).reshape(-1)
        if labels.shape[0] != bsz:
            raise ValueError('Num of labels does not match num of features')
        labels = labels.astype(jnp.int32)

    n = bsz * n_views
    # Batch-major flattening: a free reshape (no transpose copy). The SupCon
    # loss is invariant to the anchor/contrast row ordering.
    feats = features.reshape(n, dim)

    # Square tiles (multiples of 128): diagonal only intersects i==j tiles and
    # padded columns only appear in the last column block; no lcm over-padding.
    assert block_m % 128 == 0 and block_k % 128 == 0
    n128 = _round_up(n, 128)
    tile = min(block_m, block_k, n128)
    # v7x megacore: the row axis is the only "parallel" axis; make sure it has
    # at least two blocks when the problem allows it (no-op on 1-TC chips).
    if n128 // tile < 2 and n128 >= 256:
        tile = max(128, (n128 // 2) // 128 * 128)
    bm = bk = tile
    n_pad = _round_up(n, tile)
    d_pad = _round_up(dim, 128)                          # lane-dense MXU operand

    feats = feats.astype(jnp.float32)
    if (n_pad, d_pad) != (n, dim):
        feats = jnp.pad(feats, ((0, n_pad - n), (0, d_pad - dim)))
    feats = feats.astype(mxu_dtype)      # bf16 storage halves feature DMA bytes

    kernel = functools.partial(
        _supcon_kernel,
        inv_temp=1.0 / float(temperature),
        neg_scale=-(float(temperature) / float(base_temperature)),
        n_valid=n, bm=bm, bk=bk, has_col_pad=(n_pad != n),
        use_labels=use_labels)

    if use_labels:
        row_labels = jnp.repeat(labels, n_views)         # label of each row
        lab = jnp.pad(row_labels, (0, n_pad - n), constant_values=-1)
        inputs = (lab.reshape(n_pad, 1), lab.reshape(1, n_pad), feats, feats)
        in_specs = [
            pl.BlockSpec((bm, 1), lambda i, j: (i, 0)),        # row labels
            pl.BlockSpec((1, bk), lambda i, j: (0, j)),        # col labels
            pl.BlockSpec((bm, d_pad), lambda i, j: (i, 0)),    # anchor feats
            pl.BlockSpec((bk, d_pad), lambda i, j: (j, 0)),    # contrast feats
        ]
    else:
        # Explicit (binary) mask path: ship it as int8 (4x less DMA than f32);
        # batch-major ordering -> element-repeat of the [bsz, bsz] base mask.
        mask_full = jnp.repeat(jnp.repeat(jnp.asarray(mask).astype(jnp.int8),
                                          n_views, axis=0), n_views, axis=1)
        if n_pad != n:
            mask_full = jnp.pad(mask_full, ((0, n_pad - n), (0, n_pad - n)))
        inputs = (mask_full, feats, feats)
        in_specs = [
            pl.BlockSpec((bm, bk), lambda i, j: (i, j)),       # int8 mask tile
            pl.BlockSpec((bm, d_pad), lambda i, j: (i, 0)),    # anchor feats
            pl.BlockSpec((bk, d_pad), lambda i, j: (j, 0)),    # contrast feats
        ]

    per_row = pl.pallas_call(
        kernel,
        out_shape=jax.ShapeDtypeStruct((n_pad, 1), jnp.float32),
        grid=(n_pad // bm, n_pad // bk),
        in_specs=in_specs,
        out_specs=pl.BlockSpec((bm, 1), lambda i, j: (i, 0)),
        scratch_shapes=[pltpu.VMEM((bm, 1), jnp.float32)] * 4,   # m, l, s, p
        compiler_params=pltpu.CompilerParams(
            dimension_semantics=("parallel", "arbitrary"),
            vmem_limit_bytes=_vmem_limit_bytes()),
    )(*inputs)

    # loss.view(anchor_count, batch_size).mean() == mean over the N valid anchors.
    return jnp.mean(per_row[:n, 0])


def _supcon_loss_ref(features, labels=None, *, temperature=0.07,
                     base_temperature=0.07):
    """Pure-JAX reference (mirrors the PyTorch module, contrast_mode='all')."""
    bsz, n_views, dim = features.shape
    if labels is None:
        mask = jnp.eye(bsz, dtype=jnp.float32)
    else:
        labels = labels.reshape(-1, 1)
        mask = (labels == labels.T).astype(jnp.float32)
    cf = jnp.swapaxes(features, 0, 1).reshape(n_views * bsz, dim)
    adc = jnp.matmul(cf, cf.T, precision=jax.lax.Precision.HIGHEST) / temperature
    logits = adc - jnp.max(adc, axis=1, keepdims=True)
    mask = jnp.tile(mask, (n_views, n_views))
    n = n_views * bsz
    logits_mask = 1.0 - jnp.eye(n, dtype=jnp.float32)
    mask = mask * logits_mask
    exp_logits = jnp.exp(logits) * logits_mask
    log_prob = logits - jnp.log(jnp.sum(exp_logits, axis=1, keepdims=True))
    mean_log_prob_pos = jnp.sum(mask * log_prob, axis=1) / jnp.sum(mask, axis=1)
    loss = -(temperature / base_temperature) * mean_log_prob_pos
    return jnp.mean(loss.reshape(n_views, bsz))


if __name__ == "__main__":
    key = jax.random.PRNGKey(0)
    k_feat, k_lab, k_feat2, k_lab2 = jax.random.split(key, 4)

    # --- Small case (single tile: exercises the masked diagonal/padding path) ---
    bsz, n_views, dim = 8, 2, 32
    features = jax.random.normal(k_feat, (bsz, n_views, dim), dtype=jnp.float32)
    features = features / jnp.linalg.norm(features, axis=-1, keepdims=True)
    labels = jax.random.randint(k_lab, (bsz,), 0, 4)

    loss_sup_f32 = supcon_loss(features, labels=labels, mxu_dtype=jnp.float32)
    loss_sup_bf16 = supcon_loss(features, labels=labels)          # bf16 default
    loss_unsup = supcon_loss(features, mxu_dtype=jnp.float32)     # SimCLR path
    mask = (labels[:, None] == labels[None, :]).astype(jnp.float32)
    loss_mask = supcon_loss(features, mask=mask, mxu_dtype=jnp.float32)

    ref_sup = _supcon_loss_ref(features, labels=labels)
    ref_unsup = _supcon_loss_ref(features)

    # --- Medium case (2x2 tile grid: exercises the fast interior path too) ---
    bsz2, dim2 = 96, 32
    features2 = jax.random.normal(k_feat2, (bsz2, n_views, dim2), dtype=jnp.float32)
    features2 = features2 / jnp.linalg.norm(features2, axis=-1, keepdims=True)
    labels2 = jax.random.randint(k_lab2, (bsz2,), 0, 10)
    loss2 = supcon_loss(features2, labels=labels2, mxu_dtype=jnp.float32)
    ref2 = _supcon_loss_ref(features2, labels=labels2)

    jax.block_until_ready(
        (loss_sup_f32, loss_sup_bf16, loss_unsup, loss_mask, loss2))

    assert jnp.allclose(loss_sup_f32, ref_sup, atol=1.5e-2, rtol=1e-2), (
        loss_sup_f32, ref_sup)
    assert jnp.allclose(loss_unsup, ref_unsup, atol=1.5e-2, rtol=1e-2), (
        loss_unsup, ref_unsup)
    assert jnp.allclose(loss_mask, ref_sup, atol=1.5e-2, rtol=1e-2), (
        loss_mask, ref_sup)
    assert jnp.allclose(loss2, ref2, atol=1.5e-2, rtol=1e-2), (loss2, ref2)
    assert jnp.allclose(loss_sup_bf16, ref_sup, atol=1.5e-1), (
        loss_sup_bf16, ref_sup)

    print("KERNEL_OK")
</pallas_src>

<mosaic_0001>
module attributes {stable_mosaic.version = 11 : i64} {
  func.func @_supcon_kernel(%arg0: i32, %arg1: i32, %arg2: memref<128x1xi32, #tpu.memory_space<vmem>>, %arg3: memref<1x128xi32, #tpu.memory_space<vmem>>, %arg4: memref<128x128xf32, #tpu.memory_space<vmem>>, %arg5: memref<128x128xf32, #tpu.memory_space<vmem>>, %arg6: memref<128x1xf32, #tpu.memory_space<vmem>>, %arg7: memref<128x1xf32, #tpu.memory_space<vmem>>, %arg8: memref<128x1xf32, #tpu.memory_space<vmem>>, %arg9: memref<128x1xf32, #tpu.memory_space<vmem>>, %arg10: memref<128x1xf32, #tpu.memory_space<vmem>>) attributes {dimension_semantics = [#tpu.dimension_semantics<parallel>, #tpu.dimension_semantics<arbitrary>], iteration_bounds = array<i64: 1, 1>, scalar_prefetch = 0 : i64, scratch_operands = 4 : i64, tpu.core_type = #tpu.core_type<tc>, window_params = [{transform_indices = @transform_0, window_bounds = array<i64: 128, 1>}, {transform_indices = @transform_1, window_bounds = array<i64: 1, 128>}, {transform_indices = @transform_2, window_bounds = array<i64: 128, 128>}, {transform_indices = @transform_3, window_bounds = array<i64: 128, 128>}, {transform_indices = @transform_4, window_bounds = array<i64: 128, 1>}]} {
    %c0_i32 = arith.constant 0 : i32
    %0 = arith.cmpi eq, %arg1, %c0_i32 : i32
    %1 = arith.extui %0 : i1 to i32
    %c0_i32_0 = arith.constant 0 : i32
    %2 = arith.cmpi ne, %1, %c0_i32_0 : i32
    scf.if %2 {
      %cst_17 = arith.constant 0xFF800000 : f32
      %30 = vector.broadcast %cst_17 : f32 to vector<128x1xf32>
      %c0_18 = arith.constant 0 : index
      %c0_19 = arith.constant 0 : index
      %31 = vector.load %arg7[%c0_18, %c0_19] : memref<128x1xf32, #tpu.memory_space<vmem>>, vector<128x1xf32>
      tpu.vector_store %arg7[%c0_18, %c0_19], %30 {strides = array<i32>} : memref<128x1xf32, #tpu.memory_space<vmem>>, vector<128x1xf32>,
      %cst_20 = arith.constant 0.000000e+00 : f32
      %32 = vector.broadcast %cst_20 : f32 to vector<128x1xf32>
      %c0_21 = arith.constant 0 : index
      %c0_22 = arith.constant 0 : index
      %33 = vector.load %arg8[%c0_21, %c0_22] : memref<128x1xf32, #tpu.memory_space<vmem>>, vector<128x1xf32>
      tpu.vector_store %arg8[%c0_21, %c0_22], %32 {strides = array<i32>} : memref<128x1xf32, #tpu.memory_space<vmem>>, vector<128x1xf32>,
      %cst_23 = arith.constant 0.000000e+00 : f32
      %34 = vector.broadcast %cst_23 : f32 to vector<128x1xf32>
      %c0_24 = arith.constant 0 : index
      %c0_25 = arith.constant 0 : index
      %35 = vector.load %arg9[%c0_24, %c0_25] : memref<128x1xf32, #tpu.memory_space<vmem>>, vector<128x1xf32>
      tpu.vector_store %arg9[%c0_24, %c0_25], %34 {strides = array<i32>} : memref<128x1xf32, #tpu.memory_space<vmem>>, vector<128x1xf32>,
      %cst_26 = arith.constant 0.000000e+00 : f32
      %36 = vector.broadcast %cst_26 : f32 to vector<128x1xf32>
      %c0_27 = arith.constant 0 : index
      %c0_28 = arith.constant 0 : index
      %37 = vector.load %arg10[%c0_27, %c0_28] : memref<128x1xf32, #tpu.memory_space<vmem>>, vector<128x1xf32>
      tpu.vector_store %arg10[%c0_27, %c0_28], %36 {strides = array<i32>} : memref<128x1xf32, #tpu.memory_space<vmem>>, vector<128x1xf32>,
    } else {
    }
    %c0 = arith.constant 0 : index
    %c0_1 = arith.constant 0 : index
    %3 = vector.load %arg4[%c0, %c0_1] : memref<128x128xf32, #tpu.memory_space<vmem>>, vector<128x128xf32>
    %c0_2 = arith.constant 0 : index
    %c0_3 = arith.constant 0 : index
    %4 = vector.load %arg5[%c0_2, %c0_3] : memref<128x128xf32, #tpu.memory_space<vmem>>, vector<128x128xf32>
    %cst = arith.constant dense<0.000000e+00> : vector<128x128xf32>
    %5 = tpu.matmul %3, %4, %cst {dimension_numbers = #tpu.dot_dimension_numbers<[1], [1], [0], [0], [0, 0, 1, 0], [], []>} : vector<128x128xf32>, vector<128x128xf32>, vector<128x128xf32> -> vector<128x128xf32>
    %cst_4 = arith.constant 14.2857141 : f32
    %6 = vector.broadcast %cst_4 : f32 to vector<128x128xf32>
    %7 = arith.mulf %5, %6 : vector<128x128xf32>
    %c0_5 = arith.constant 0 : index
    %c0_6 = arith.constant 0 : index
    %8 = vector.load %arg2[%c0_5, %c0_6] : memref<128x1xi32, #tpu.memory_space<vmem>>, vector<128x1xi32>
    %c0_7 = arith.constant 0 : index
    %c0_8 = arith.constant 0 : index
    %9 = vector.load %arg3[%c0_7, %c0_8] : memref<1x128xi32, #tpu.memory_space<vmem>>, vector<1x128xi32>
    %10 = vector.broadcast %8 : vector<128x1xi32> to vector<128x128xi32>
    %11 = vector.broadcast %9 : vector<1x128xi32> to vector<128x128xi32>
    %12 = arith.cmpi eq, %10, %11 : vector<128x128xi32>
    %c128_i32 = arith.constant 128 : i32
    %13 = arith.muli %arg0, %c128_i32 : i32
    %c128_i32_9 = arith.constant 128 : i32
    %14 = arith.muli %arg1, %c128_i32_9 : i32
    %c128_i32_10 = arith.constant 128 : i32
    %15 = arith.addi %14, %c128_i32_10 : i32
    %16 = arith.cmpi slt, %13, %15 : i32
    %c128_i32_11 = arith.constant 128 : i32
    %17 = arith.addi %13, %c128_i32_11 : i32
    %18 = arith.cmpi slt, %14, %17 : i32
    %19 = arith.andi %16, %18 : i1
    %c0_i32_12 = arith.constant 0 : i32
    %20 = arith.cmpi eq, %arg1, %c0_i32_12 : i32
    %21 = arith.ori %19, %20 : i1
    %true = arith.constant true
    %22 = arith.xori %21, %true : i1
    %23 = arith.extui %22 : i1 to i32
    %c0_i32_13 = arith.constant 0 : i32
    %24 = arith.cmpi ne, %23, %c0_i32_13 : i32
    scf.if %24 {
      %cst_17 = arith.constant dense<0xFF800000> : vector<128xf32>
      %30 = vector.multi_reduction <maximumf>, %7, %cst_17 [1] : vector<128x128xf32> to vector<128xf32>
      %31 = vector.shape_cast %30 : vector<128xf32> to vector<128x1xf32>
      %c0_18 = arith.constant 0 : index
      %c0_19 = arith.constant 0 : index
      %32 = vector.load %arg7[%c0_18, %c0_19] : memref<128x1xf32, #tpu.memory_space<vmem>>, vector<128x1xf32>
      %33 = arith.maximumf %32, %31 : vector<128x1xf32>
      %34 = vector.broadcast %33 : vector<128x1xf32> to vector<128x128xf32>
      %35 = arith.subf %7, %34 : vector<128x128xf32>
      %36 = math.exp %35 : vector<128x128xf32>
      %c0_20 = arith.constant 0 : index
      %c0_21 = arith.constant 0 : index
      %37 = vector.load %arg8[%c0_20, %c0_21] : memref<128x1xf32, #tpu.memory_space<vmem>>, vector<128x1xf32>
      %38 = arith.subf %32, %33 : vector<128x1xf32>
      %39 = math.exp %38 : vector<128x1xf32>
      %40 = arith.mulf %37, %39 : vector<128x1xf32>
      %cst_22 = arith.constant dense<0.000000e+00> : vector<128xf32>
      %41 = vector.multi_reduction <add>, %36, %cst_22 [1] : vector<128x128xf32> to vector<128xf32>
      %42 = vector.shape_cast %41 : vector<128xf32> to vector<128x1xf32>
      %43 = arith.addf %40, %42 : vector<128x1xf32>
      %c0_23 = arith.constant 0 : index
      %c0_24 = arith.constant 0 : index
      %44 = vector.load %arg8[%c0_23, %c0_24] : memref<128x1xf32, #tpu.memory_space<vmem>>, vector<128x1xf32>
      tpu.vector_store %arg8[%c0_23, %c0_24], %43 {strides = array<i32>} : memref<128x1xf32, #tpu.memory_space<vmem>>, vector<128x1xf32>,
      %c0_25 = arith.constant 0 : index
      %c0_26 = arith.constant 0 : index
      %45 = vector.load %arg7[%c0_25, %c0_26] : memref<128x1xf32, #tpu.memory_space<vmem>>, vector<128x1xf32>
      tpu.vector_store %arg7[%c0_25, %c0_26], %33 {strides = array<i32>} : memref<128x1xf32, #tpu.memory_space<vmem>>, vector<128x1xf32>,
      %c0_27 = arith.constant 0 : index
      %c0_28 = arith.constant 0 : index
      %46 = vector.load %arg9[%c0_27, %c0_28] : memref<128x1xf32, #tpu.memory_space<vmem>>, vector<128x1xf32>
      %cst_29 = arith.constant 0.000000e+00 : f32
      %47 = vector.broadcast %cst_29 : f32 to vector<128x128xf32>
      %48 = arith.select %12, %7, %47 : vector<128x128xi1>, vector<128x128xf32>
      %cst_30 = arith.constant dense<0.000000e+00> : vector<128xf32>
      %49 = vector.multi_reduction <add>, %48, %cst_30 [1] : vector<128x128xf32> to vector<128xf32>
      %50 = vector.shape_cast %49 : vector<128xf32> to vector<128x1xf32>
      %51 = arith.addf %46, %50 : vector<128x1xf32>
      %c0_31 = arith.constant 0 : index
      %c0_32 = arith.constant 0 : index
      %52 = vector.load %arg9[%c0_31, %c0_32] : memref<128x1xf32, #tpu.memory_space<vmem>>, vector<128x1xf32>
      tpu.vector_store %arg9[%c0_31, %c0_32], %51 {strides = array<i32>} : memref<128x1xf32, #tpu.memory_space<vmem>>, vector<128x1xf32>,
      %c0_33 = arith.constant 0 : index
      %c0_34 = arith.constant 0 : index
      %53 = vector.load %arg10[%c0_33, %c0_34] : memref<128x1xf32, #tpu.memory_space<vmem>>, vector<128x1xf32>
      %cst_35 = arith.constant 1.000000e+00 : f32
      %cst_36 = arith.constant 0.000000e+00 : f32
      %54 = vector.broadcast %cst_35 : f32 to vector<128x128xf32>
      %55 = vector.broadcast %cst_36 : f32 to vector<128x128xf32>
      %56 = arith.select %12, %54, %55 : vector<128x128xi1>, vector<128x128xf32>
      %cst_37 = arith.constant dense<0.000000e+00> : vector<128xf32>
      %57 = vector.multi_reduction <add>, %56, %cst_37 [1] : vector<128x128xf32> to vector<128xf32>
      %58 = vector.shape_cast %57 : vector<128xf32> to vector<128x1xf32>
      %59 = arith.addf %53, %58 : vector<128x1xf32>
      %c0_38 = arith.constant 0 : index
      %c0_39 = arith.constant 0 : index
      %60 = vector.load %arg10[%c0_38, %c0_39] : memref<128x1xf32, #tpu.memory_space<vmem>>, vector<128x1xf32>
      tpu.vector_store %arg10[%c0_38, %c0_39], %59 {strides = array<i32>} : memref<128x1xf32, #tpu.memory_space<vmem>>, vector<128x1xf32>,
    } else {
    }
    %25 = arith.extui %21 : i1 to i32
    %c0_i32_14 = arith.constant 0 : i32
    %26 = arith.cmpi ne, %25, %c0_i32_14 : i32
    scf.if %26 {
      %30 = tpu.iota {dimensions = array<i32: 0>} : vector<128x128xi32>
      %31 = vector.broadcast %13 : i32 to vector<128x128xi32>
      %32 = arith.addi %31, %30 : vector<128x128xi32>
      %33 = tpu.iota {dimensions = array<i32: 1>} : vector<128x128xi32>
      %34 = vector.broadcast %14 : i32 to vector<128x128xi32>
      %35 = arith.addi %34, %33 : vector<128x128xi32>
      %36 = arith.cmpi ne, %32, %35 : vector<128x128xi32>
      %c16_i32 = arith.constant 16 : i32
      %37 = vector.broadcast %c16_i32 : i32 to vector<128x128xi32>
      %38 = arith.cmpi slt, %35, %37 : vector<128x128xi32>
      %39 = arith.andi %38, %36 : vector<128x128xi1>
      %cst_17 = arith.constant 0xFF800000 : f32
      %40 = vector.broadcast %cst_17 : f32 to vector<128x128xf32>
      %41 = arith.select %38, %7, %40 : vector<128x128xi1>, vector<128x128xf32>
      %cst_18 = arith.constant dense<0xFF800000> : vector<128xf32>
      %42 = vector.multi_reduction <maximumf>, %41, %cst_18 [1] : vector<128x128xf32> to vector<128xf32>
      %43 = vector.shape_cast %42 : vector<128xf32> to vector<128x1xf32>
      %44 = arith.andi %12, %39 : vector<128x128xi1>
      %c0_19 = arith.constant 0 : index
      %c0_20 = arith.constant 0 : index
      %45 = vector.load %arg7[%c0_19, %c0_20] : memref<128x1xf32, #tpu.memory_space<vmem>>, vector<128x1xf32>
      %46 = arith.maximumf %45, %43 : vector<128x1xf32>
      %47 = vector.broadcast %46 : vector<128x1xf32> to vector<128x128xf32>
      %48 = arith.subf %7, %47 : vector<128x128xf32>
      %49 = math.exp %48 : vector<128x128xf32>
      %cst_21 = arith.constant 0.000000e+00 : f32
      %50 = vector.broadcast %cst_21 : f32 to vector<128x128xf32>
      %51 = arith.select %39, %49, %50 : vector<128x128xi1>, vector<128x128xf32>
      %c0_22 = arith.constant 0 : index
      %c0_23 = arith.constant 0 : index
      %52 = vector.load %arg8[%c0_22, %c0_23] : memref<128x1xf32, #tpu.memory_space<vmem>>, vector<128x1xf32>
      %53 = arith.subf %45, %46 : vector<128x1xf32>
      %54 = math.exp %53 : vector<128x1xf32>
      %55 = arith.mulf %52, %54 : vector<128x1xf32>
      %cst_24 = arith.constant dense<0.000000e+00> : vector<128xf32>
      %56 = vector.multi_reduction <add>, %51, %cst_24 [1] : vector<128x128xf32> to vector<128xf32>
      %57 = vector.shape_cast %56 : vector<128xf32> to vector<128x1xf32>
      %58 = arith.addf %55, %57 : vector<128x1xf32>
      %c0_25 = arith.constant 0 : index
      %c0_26 = arith.constant 0 : index
      %59 = vector.load %arg8[%c0_25, %c0_26] : memref<128x1xf32, #tpu.memory_space<vmem>>, vector<128x1xf32>
      tpu.vector_store %arg8[%c0_25, %c0_26], %58 {strides = array<i32>} : memref<128x1xf32, #tpu.memory_space<vmem>>, vector<128x1xf32>,
      %c0_27 = arith.constant 0 : index
      %c0_28 = arith.constant 0 : index
      %60 = vector.load %arg7[%c0_27, %c0_28] : memref<128x1xf32, #tpu.memory_space<vmem>>, vector<128x1xf32>
      tpu.vector_store %arg7[%c0_27, %c0_28], %46 {strides = array<i32>} : memref<128x1xf32, #tpu.memory_space<vmem>>, vector<128x1xf32>,
      %c0_29 = arith.constant 0 : index
      %c0_30 = arith.constant 0 : index
      %61 = vector.load %arg9[%c0_29, %c0_30] : memref<128x1xf32, #tpu.memory_space<vmem>>, vector<128x1xf32>
      %cst_31 = arith.constant 0.000000e+00 : f32
      %62 = vector.broadcast %cst_31 : f32 to vector<128x128xf32>
      %63 = arith.select %44, %7, %62 : vector<128x128xi1>, vector<128x128xf32>
      %cst_32 = arith.constant dense<0.000000e+00> : vector<128xf32>
      %64 = vector.multi_reduction <add>, %63, %cst_32 [1] : vector<128x128xf32> to vector<128xf32>
      %65 = vector.shape_cast %64 : vector<128xf32> to vector<128x1xf32>
      %66 = arith.addf %61, %65 : vector<128x1xf32>
      %c0_33 = arith.constant 0 : index
      %c0_34 = arith.constant 0 : index
      %67 = vector.load %arg9[%c0_33, %c0_34] : memref<128x1xf32, #tpu.memory_space<vmem>>, vector<128x1xf32>
      tpu.vector_store %arg9[%c0_33, %c0_34], %66 {strides = array<i32>} : memref<128x1xf32, #tpu.memory_space<vmem>>, vector<128x1xf32>,
      %c0_35 = arith.constant 0 : index
      %c0_36 = arith.constant 0 : index
      %68 = vector.load %arg10[%c0_35, %c0_36] : memref<128x1xf32, #tpu.memory_space<vmem>>, vector<128x1xf32>
      %cst_37 = arith.constant 1.000000e+00 : f32
      %cst_38 = arith.constant 0.000000e+00 : f32
      %69 = vector.broadcast %cst_37 : f32 to vector<128x128xf32>
      %70 = vector.broadcast %cst_38 : f32 to vector<128x128xf32>
      %71 = arith.select %44, %69, %70 : vector<128x128xi1>, vector<128x128xf32>
      %cst_39 = arith.constant dense<0.000000e+00> : vector<128xf32>
      %72 = vector.multi_reduction <add>, %71, %cst_39 [1] : vector<128x128xf32> to vector<128xf32>
      %73 = vector.shape_cast %72 : vector<128xf32> to vector<128x1xf32>
      %74 = arith.addf %68, %73 : vector<128x1xf32>
      %c0_40 = arith.constant 0 : index
      %c0_41 = arith.constant 0 : index
      %75 = vector.load %arg10[%c0_40, %c0_41] : memref<128x1xf32, #tpu.memory_space<vmem>>, vector<128x1xf32>
      tpu.vector_store %arg10[%c0_40, %c0_41], %74 {strides = array<i32>} : memref<128x1xf32, #tpu.memory_space<vmem>>, vector<128x1xf32>,
    } else {
    }
    %c0_i32_15 = arith.constant 0 : i32
    %27 = arith.cmpi eq, %arg1, %c0_i32_15 : i32
    %28 = arith.extui %27 : i1 to i32
    %c0_i32_16 = arith.constant 0 : i32
    %29 = arith.cmpi ne, %28, %c0_i32_16 : i32
    scf.if %29 {
      %c0_17 = arith.constant 0 : index
      %c0_18 = arith.constant 0 : index
      %30 = vector.load %arg10[%c0_17, %c0_18] : memref<128x1xf32, #tpu.memory_space<vmem>>, vector<128x1xf32>
      %31 = tpu.reciprocal %30 : vector<128x1xf32> -> vector<128x1xf32>
      %c0_19 = arith.constant 0 : index
      %c0_20 = arith.constant 0 : index
      %32 = vector.load %arg9[%c0_19, %c0_20] : memref<128x1xf32, #tpu.memory_space<vmem>>, vector<128x1xf32>
      %33 = arith.mulf %32, %31 : vector<128x1xf32>
      %c0_21 = arith.constant 0 : index
      %c0_22 = arith.constant 0 : index
      %34 = vector.load %arg7[%c0_21, %c0_22] : memref<128x1xf32, #tpu.memory_space<vmem>>, vector<128x1xf32>
      %35 = arith.subf %33, %34 : vector<128x1xf32>
      %c0_23 = arith.constant 0 : index
      %c0_24 = arith.constant 0 : index
      %36 = vector.load %arg8[%c0_23, %c0_24] : memref<128x1xf32, #tpu.memory_space<vmem>>, vector<128x1xf32>
      %37 = math.log %36 : vector<128x1xf32>
      %38 = arith.subf %35, %37 : vector<128x1xf32>
      %cst_25 = arith.constant -1.000000e+00 : f32
      %39 = vector.broadcast %cst_25 : f32 to vector<128x1xf32>
      %40 = arith.mulf %39, %38 : vector<128x1xf32>
      %c0_26 = arith.constant 0 : index
      %c0_27 = arith.constant 0 : index
      %41 = vector.load %arg6[%c0_26, %c0_27] : memref<128x1xf32, #tpu.memory_space<vmem>>, vector<128x1xf32>
      tpu.vector_store %arg6[%c0_26, %c0_27], %40 {strides = array<i32>} : memref<128x1xf32, #tpu.memory_space<vmem>>, vector<128x1xf32>,
    } else {
    }
    return
  }
  func.func @transform_0(%arg0: i32, %arg1: i32) -> (i32, i32) {
    %c0_i32 = arith.constant 0 : i32
    %c0_i32_0 = arith.constant 0 : i32
    return %arg0, %c0_i32 : i32, i32
  }
  func.func @transform_1(%arg0: i32, %arg1: i32) -> (i32, i32) {
    %c0_i32 = arith.constant 0 : i32
    %c0_i32_0 = arith.constant 0 : i32
    return %c0_i32, %arg1 : i32, i32
  }
  func.func @transform_2(%arg0: i32, %arg1: i32) -> (i32, i32) {
    %c0_i32 = arith.constant 0 : i32
    %c0_i32_0 = arith.constant 0 : i32
    return %arg0, %c0_i32 : i32, i32
  }
  func.func @transform_3(%arg0: i32, %arg1: i32) -> (i32, i32) {
    %c0_i32 = arith.constant 0 : i32
    %c0_i32_0 = arith.constant 0 : i32
    return %arg1, %c0_i32 : i32, i32
  }
  func.func @transform_4(%arg0: i32, %arg1: i32) -> (i32, i32) {
    %c0_i32 = arith.constant 0 : i32
    %c0_i32_0 = arith.constant 0 : i32
    return %arg0, %c0_i32 : i32, i32
  }
}

</mosaic_0001>

<llo_original>
// kernel: tpu_custom_call.1
$region0: #{tpu_custom_call.1}
  #allocation0 [shape = 'u32[]', space=smem, size = 0x4, offset = 0x4, fixed_abs, tag = 'smem constant byte address 0x4 - core index']
  #allocation1 [shape = 'u32[72,128]{1,0:T(1,128)}', space=vmem, size = 0x9000, scoped, tag = 'internal scratch']
  #allocation2 [shape = 'f32[128,1]{1,0:T(8,128)}', space=vmem, size = 0x10000, scoped, tag = 'scratch operand']
  #allocation3 [shape = 'f32[128,1]{1,0:T(8,128)}', space=vmem, size = 0x10000, scoped, tag = 'scratch operand']
  #allocation4 [shape = 'f32[128,1]{1,0:T(8,128)}', space=vmem, size = 0x10000, scoped, tag = 'scratch operand']
  #allocation5 [shape = 'f32[128,1]{1,0:T(8,128)}', space=vmem, size = 0x10000, scoped, tag = 'scratch operand']
  %s0 = inlined_call_operand.vmem [shape: s32[128,1], index: 0, kind: input, shape index: {}]
  %s1 = inlined_call_operand.vmem [shape: s32[1,128], index: 1, kind: input, shape index: {}]
  %s2 = inlined_call_operand.vmem [shape: f32[128,128], index: 2, kind: input, shape index: {}]
  %s3 = inlined_call_operand.hbm [shape: f32[128,128], index: 3, kind: input, shape index: {}]
  %s4 = inlined_call_operand.vmem [shape: f32[128,1], index: 4, kind: output, shape index: {}]
  %s5 = sld [smem:[#allocation0]]
  $region46: #{tpu_custom_call.1} parent=0
    _
  %s7 = ssub.s32 1, %s5
  %s8 = scalar_select 0, %s7, %s5
  $region1: #{tpu_custom_call.1} parent=0
    #allocation6 [shape = 'u8[65536]{0}', space=vmem, size = 0x10000, scoped, tag = 'input window, operand 3, single buffered']
    #allocation7 [shape = 's32[1]{0}', space=sflag, size = 0x4, scoped, tag = 'scoped memory for tpu_custom_call.1']
    %9 = vsyncpa [#allocation7], 0
    // Predicated region
    $region2: #{tpu_custom_call.1} parent=1 // pred_check
      _
    $region3: #{tpu_custom_call.1} parent=1 // pred_check_branch
      %11 = sbr.rel (0) target = $region5
    $region4: #{tpu_custom_call.1} parent=1 // pred_region
      _
    $region5: #{tpu_custom_call.1} parent=1 // pred_fallthru
      _
    // Predicated region
    $region6: #{tpu_custom_call.1} parent=1 // pred_check
      _
    $region7: #{tpu_custom_call.1} parent=1 // pred_check_branch
      %13 = sbr.rel (0) target = $region9
    $region8: #{tpu_custom_call.1} parent=1 // pred_region
      _
    $region9: #{tpu_custom_call.1} parent=1 // pred_fallthru
      _
    // Predicated region
    $region10: #{tpu_custom_call.1} parent=1 // pred_check
      _
    $region11: #{tpu_custom_call.1} parent=1 // pred_check_branch
      %15 = sbr.rel (0) target = $region13
    $region12: #{tpu_custom_call.1} parent=1 // pred_region
      _
    $region13: #{tpu_custom_call.1} parent=1 // pred_fallthru
      _
    // Predicated region
    $region14: #{tpu_custom_call.1} parent=1 // pred_check
      _
    $region15: #{tpu_custom_call.1} parent=1 // pred_check_branch
      %17 = sbr.rel (0) target = $region17
    $region16: #{tpu_custom_call.1} parent=1 // pred_region
      %19 = vsyncadd [#allocation7], 0
      %s20 = sshll.u32 %s3, 4
      %s21 = int_to_ptr.hbm [resolvable:$true] %s20
      %s22 = sshll.u32 [#allocation6], 4
      %s23 = int_to_ptr.vmem [resolvable:$true] %s22
      %28 = dma.hbm_to_vmem [thread:$0]  %s21, 2048, %s23, [#allocation7], 128, 128, 8
    $region17: #{tpu_custom_call.1} parent=1 // pred_fallthru
      _
    // Predicated region
    $region18: #{tpu_custom_call.1} parent=1 // pred_check
      _
    $region19: #{tpu_custom_call.1} parent=1 // pred_check_branch
      %30 = sbr.rel (0) target = $region21
    $region20: #{tpu_custom_call.1} parent=1 // pred_region
      %32 = dma.done [#allocation7], 2048
    $region21: #{tpu_custom_call.1} parent=1 // pred_fallthru
      _
    %p33 = scmp.eq.s32.totalorder 0, 0
    // Predicated region
    $region22: #{tpu_custom_call.1} parent=1 // pred_check
      %p34 = pneg %p33
    $region23: #{tpu_custom_call.1} parent=1 // pred_check_branch
      %36 = sbr.rel (%p34) target = $region25
    $region24: #{tpu_custom_call.1} parent=1 // pred_region
      %vm37 = vcmask 7168
      %38 = vst.msk [vmem:[#allocation2] sm:$0xff] %vm37, -inf
      %39 = vst.msk [vmem:[#allocation2 + $0x8] sm:$0xff] %vm37, -inf
      %40 = vst.msk [vmem:[#allocation2 + $0x10] sm:$0xff] %vm37, -inf
      %41 = vst.msk [vmem:[#allocation2 + $0x18] sm:$0xff] %vm37, -inf
      %42 = vst.msk [vmem:[#allocation2 + $0x20] sm:$0xff] %vm37, -inf
      %43 = vst.msk [vmem:[#allocation2 + $0x28] sm:$0xff] %vm37, -inf
      %44 = vst.msk [vmem:[#allocation2 + $0x30] sm:$0xff] %vm37, -inf
      %45 = vst.msk [vmem:[#allocation2 + $0x38] sm:$0xff] %vm37, -inf
      %46 = vst.msk [vmem:[#allocation2 + $0x40] sm:$0xff] %vm37, -inf
      %47 = vst.msk [vmem:[#allocation2 + $0x48] sm:$0xff] %vm37, -inf
      %48 = vst.msk [vmem:[#allocation2 + $0x50] sm:$0xff] %vm37, -inf
      %49 = vst.msk [vmem:[#allocation2 + $0x58] sm:$0xff] %vm37, -inf
      %50 = vst.msk [vmem:[#allocation2 + $0x60] sm:$0xff] %vm37, -inf
      %51 = vst.msk [vmem:[#allocation2 + $0x68] sm:$0xff] %vm37, -inf
      %52 = vst.msk [vmem:[#allocation2 + $0x70] sm:$0xff] %vm37, -inf
      %53 = vst.msk [vmem:[#allocation2 + $0x78] sm:$0xff] %vm37, -inf
      %54 = vst.msk [vmem:[#allocation3] sm:$0xff] %vm37, 0.0
      %55 = vst.msk [vmem:[#allocation3 + $0x8] sm:$0xff] %vm37, 0.0
      %56 = vst.msk [vmem:[#allocation3 + $0x10] sm:$0xff] %vm37, 0.0
      %57 = vst.msk [vmem:[#allocation3 + $0x18] sm:$0xff] %vm37, 0.0
      %58 = vst.msk [vmem:[#allocation3 + $0x20] sm:$0xff] %vm37, 0.0
      %59 = vst.msk [vmem:[#allocation3 + $0x28] sm:$0xff] %vm37, 0.0
      %60 = vst.msk [vmem:[#allocation3 + $0x30] sm:$0xff] %vm37, 0.0
      %61 = vst.msk [vmem:[#allocation3 + $0x38] sm:$0xff] %vm37, 0.0
      %62 = vst.msk [vmem:[#allocation3 + $0x40] sm:$0xff] %vm37, 0.0
      %63 = vst.msk [vmem:[#allocation3 + $0x48] sm:$0xff] %vm37, 0.0
      %64 = vst.msk [vmem:[#allocation3 + $0x50] sm:$0xff] %vm37, 0.0
      %65 = vst.msk [vmem:[#allocation3 + $0x58] sm:$0xff] %vm37, 0.0
      %66 = vst.msk [vmem:[#allocation3 + $0x60] sm:$0xff] %vm37, 0.0
      %67 = vst.msk [vmem:[#allocation3 + $0x68] sm:$0xff] %vm37, 0.0
      %68 = vst.msk [vmem:[#allocation3 + $0x70] sm:$0xff] %vm37, 0.0
      %69 = vst.msk [vmem:[#allocation3 + $0x78] sm:$0xff] %vm37, 0.0
      %70 = vst.msk [vmem:[#allocation4] sm:$0xff] %vm37, 0.0
      %71 = vst.msk [vmem:[#allocation4 + $0x8] sm:$0xff] %vm37, 0.0
      %72 = vst.msk [vmem:[#allocation4 + $0x10] sm:$0xff] %vm37, 0.0
      %73 = vst.msk [vmem:[#allocation4 + $0x18] sm:$0xff] %vm37, 0.0
      %74 = vst.msk [vmem:[#allocation4 + $0x20] sm:$0xff] %vm37, 0.0
      %75 = vst.msk [vmem:[#allocation4 + $0x28] sm:$0xff] %vm37, 0.0
      %76 = vst.msk [vmem:[#allocation4 + $0x30] sm:$0xff] %vm37, 0.0
      %77 = vst.msk [vmem:[#allocation4 + $0x38] sm:$0xff] %vm37, 0.0
      %78 = vst.msk [vmem:[#allocation4 + $0x40] sm:$0xff] %vm37, 0.0
      %79 = vst.msk [vmem:[#allocation4 + $0x48] sm:$0xff] %vm37, 0.0
      %80 = vst.msk [vmem:[#allocation4 + $0x50] sm:$0xff] %vm37, 0.0
      %81 = vst.msk [vmem:[#allocation4 + $0x58] sm:$0xff] %vm37, 0.0
      %82 = vst.msk [vmem:[#allocation4 + $0x60] sm:$0xff] %vm37, 0.0
      %83 = vst.msk [vmem:[#allocation4 + $0x68] sm:$0xff] %vm37, 0.0
      %84 = vst.msk [vmem:[#allocation4 + $0x70] sm:$0xff] %vm37, 0.0
      %85 = vst.msk [vmem:[#allocation4 + $0x78] sm:$0xff] %vm37, 0.0
      %86 = vst.msk [vmem:[#allocation5] sm:$0xff] %vm37, 0.0
      %87 = vst.msk [vmem:[#allocation5 + $0x8] sm:$0xff] %vm37, 0.0
      %88 = vst.msk [vmem:[#allocation5 + $0x10] sm:$0xff] %vm37, 0.0
      %89 = vst.msk [vmem:[#allocation5 + $0x18] sm:$0xff] %vm37, 0.0
      %90 = vst.msk [vmem:[#allocation5 + $0x20] sm:$0xff] %vm37, 0.0
      %91 = vst.msk [vmem:[#allocation5 + $0x28] sm:$0xff] %vm37, 0.0
      %92 = vst.msk [vmem:[#allocation5 + $0x30] sm:$0xff] %vm37, 0.0
      %93 = vst.msk [vmem:[#allocation5 + $0x38] sm:$0xff] %vm37, 0.0
      %94 = vst.msk [vmem:[#allocation5 + $0x40] sm:$0xff] %vm37, 0.0
      %95 = vst.msk [vmem:[#allocation5 + $0x48] sm:$0xff] %vm37, 0.0
      %96 = vst.msk [vmem:[#allocation5 + $0x50] sm:$0xff] %vm37, 0.0
      %97 = vst.msk [vmem:[#allocation5 + $0x58] sm:$0xff] %vm37, 0.0
      %98 = vst.msk [vmem:[#allocation5 + $0x60] sm:$0xff] %vm37, 0.0
      %99 = vst.msk [vmem:[#allocation5 + $0x68] sm:$0xff] %vm37, 0.0
      %100 = vst.msk [vmem:[#allocation5 + $0x70] sm:$0xff] %vm37, 0.0
      %101 = vst.msk [vmem:[#allocation5 + $0x78] sm:$0xff] %vm37, 0.0
    $region25: #{tpu_custom_call.1} parent=1 // pred_fallthru
      _
    %v102 = vld [vmem:[%s2] sm:$0xff]
    %v103 = vld [vmem:[%s2 + $0x8] sm:$0xff]
    %v104 = vld [vmem:[%s2 + $0x10] sm:$0xff]
    %v105 = vld [vmem:[%s2 + $0x18] sm:$0xff]
    %v106 = vld [vmem:[%s2 + $0x20] sm:$0xff]
    %v107 = vld [vmem:[%s2 + $0x28] sm:$0xff]
    %v108 = vld [vmem:[%s2 + $0x30] sm:$0xff]
    %v109 = vld [vmem:[%s2 + $0x38] sm:$0xff]
    %v110 = vld [vmem:[%s2 + $0x40] sm:$0xff]
    %v111 = vld [vmem:[%s2 + $0x48] sm:$0xff]
    %v112 = vld [vmem:[%s2 + $0x50] sm:$0xff]
    %v113 = vld [vmem:[%s2 + $0x58] sm:$0xff]
    %v114 = vld [vmem:[%s2 + $0x60] sm:$0xff]
    %v115 = vld [vmem:[%s2 + $0x68] sm:$0xff]
    %v116 = vld [vmem:[%s2 + $0x70] sm:$0xff]
    %v117 = vld [vmem:[%s2 + $0x78] sm:$0xff]
    %v118 = vld [vmem:[#allocation6] sm:$0xff]
    %v119 = vld [vmem:[#allocation6 + $0x8] sm:$0xff]
    %v120 = vld [vmem:[#allocation6 + $0x10] sm:$0xff]
    %v121 = vld [vmem:[#allocation6 + $0x18] sm:$0xff]
    %v122 = vld [vmem:[#allocation6 + $0x20] sm:$0xff]
    %v123 = vld [vmem:[#allocation6 + $0x28] sm:$0xff]
    %v124 = vld [vmem:[#allocation6 + $0x30] sm:$0xff]
    %v125 = vld [vmem:[#allocation6 + $0x38] sm:$0xff]
    %v126 = vld [vmem:[#allocation6 + $0x40] sm:$0xff]
    %v127 = vld [vmem:[#allocation6 + $0x48] sm:$0xff]
    %v128 = vld [vmem:[#allocation6 + $0x50] sm:$0xff]
    %v129 = vld [vmem:[#allocation6 + $0x58] sm:$0xff]
    %v130 = vld [vmem:[#allocation6 + $0x60] sm:$0xff]
    %v131 = vld [vmem:[#allocation6 + $0x68] sm:$0xff]
    %v132 = vld [vmem:[#allocation6 + $0x70] sm:$0xff]
    %v133 = vld [vmem:[#allocation6 + $0x78] sm:$0xff]
    %134 = vmatpush.xpose.msra.mxu0 %v133
    %135 = vmatpush.xpose.msra.mxu0 %v132
    %136 = vmatpush.xpose.msra.mxu0 %v131
    %137 = vmatpush.xpose.msra.mxu0 %v130
    %138 = vmatpush.xpose.msra.mxu0 %v129
    %139 = vmatpush.xpose.msra.mxu0 %v128
    %140 = vmatpush.xpose.msra.mxu0 %v127
    %141 = vmatpush.xpose.msra.mxu0 %v126
    %142 = vmatpush.xpose.msra.mxu0 %v125
    %143 = vmatpush.xpose.msra.mxu0 %v124
    %144 = vmatpush.xpose.msra.mxu0 %v123
    %145 = vmatpush.xpose.msra.mxu0 %v122
    %146 = vmatpush.xpose.msra.mxu0 %v121
    %147 = vmatpush.xpose.msra.mxu0 %v120
    %148 = vmatpush.xpose.msra.mxu0 %v119
    %149 = vmatpush.xpose.msra.mxu0 %v118
    %150 = vmatmul.f32.gmra.mxu0 %v102
    %v151 = vpop.f32.mrf.mxu0
    %v152 = vadd.f32 0.0, %v151
    %153 = vmatmul.f32.gmra.mxu0 %v103
    %v154 = vpop.f32.mrf.mxu0
    %v155 = vadd.f32 0.0, %v154
    %156 = vmatmul.f32.gmra.mxu0 %v104
    %v157 = vpop.f32.mrf.mxu0
    %v158 = vadd.f32 0.0, %v157
    %159 = vmatmul.f32.gmra.mxu0 %v105
    %v160 = vpop.f32.mrf.mxu0
    %v161 = vadd.f32 0.0, %v160
    %162 = vmatmul.f32.gmra.mxu0 %v106
    %v163 = vpop.f32.mrf.mxu0
    %v164 = vadd.f32 0.0, %v163
    %165 = vmatmul.f32.gmra.mxu0 %v107
    %v166 = vpop.f32.mrf.mxu0
    %v167 = vadd.f32 0.0, %v166
    %168 = vmatmul.f32.gmra.mxu0 %v108
    %v169 = vpop.f32.mrf.mxu0
    %v170 = vadd.f32 0.0, %v169
    %171 = vmatmul.f32.gmra.mxu0 %v109
    %v172 = vpop.f32.mrf.mxu0
    %v173 = vadd.f32 0.0, %v172
    %174 = vmatmul.f32.gmra.mxu0 %v110
    %v175 = vpop.f32.mrf.mxu0
    %v176 = vadd.f32 0.0, %v175
    %177 = vmatmul.f32.gmra.mxu0 %v111
    %v178 = vpop.f32.mrf.mxu0
    %v179 = vadd.f32 0.0, %v178
    %180 = vmatmul.f32.gmra.mxu0 %v112
    %v181 = vpop.f32.mrf.mxu0
    %v182 = vadd.f32 0.0, %v181
    %183 = vmatmul.f32.gmra.mxu0 %v113
    %v184 = vpop.f32.mrf.mxu0
    %v185 = vadd.f32 0.0, %v184
    %186 = vmatmul.f32.gmra.mxu0 %v114
    %v187 = vpop.f32.mrf.mxu0
    %v188 = vadd.f32 0.0, %v187
    %189 = vmatmul.f32.gmra.mxu0 %v115
    %v190 = vpop.f32.mrf.mxu0
    %v191 = vadd.f32 0.0, %v190
    %192 = vmatmul.f32.gmra.mxu0 %v116
    %v193 = vpop.f32.mrf.mxu0
    %v194 = vadd.f32 0.0, %v193
    %195 = vmatmul.f32.gmra.mxu0 %v117
    %v196 = vpop.f32.mrf.mxu0
    %v197 = vadd.f32 0.0, %v196
    %198 = vdwg.mxu0
    %v199 = vmul.f32 %v152, 14.285714
    %v200 = vmul.f32 %v155, 14.285714
    %v201 = vmul.f32 %v158, 14.285714
    %v202 = vmul.f32 %v161, 14.285714
    %v203 = vmul.f32 %v164, 14.285714
    %v204 = vmul.f32 %v167, 14.285714
    %v205 = vmul.f32 %v170, 14.285714
    %v206 = vmul.f32 %v173, 14.285714
    %v207 = vmul.f32 %v176, 14.285714
    %v208 = vmul.f32 %v179, 14.285714
    %v209 = vmul.f32 %v182, 14.285714
    %v210 = vmul.f32 %v185, 14.285714
    %v211 = vmul.f32 %v188, 14.285714
    %v212 = vmul.f32 %v191, 14.285714
    %v213 = vmul.f32 %v194, 14.285714
    %v214 = vmul.f32 %v197, 14.285714
    %v215 = vld [vmem:[%s0] sm:$0xff]
    %v216 = vld [vmem:[%s0 + $0x8] sm:$0xff]
    %v217 = vld [vmem:[%s0 + $0x10] sm:$0xff]
    %v218 = vld [vmem:[%s0 + $0x18] sm:$0xff]
    %v219 = vld [vmem:[%s0 + $0x20] sm:$0xff]
    %v220 = vld [vmem:[%s0 + $0x28] sm:$0xff]
    %v221 = vld [vmem:[%s0 + $0x30] sm:$0xff]
    %v222 = vld [vmem:[%s0 + $0x38] sm:$0xff]
    %v223 = vld [vmem:[%s0 + $0x40] sm:$0xff]
    %v224 = vld [vmem:[%s0 + $0x48] sm:$0xff]
    %v225 = vld [vmem:[%s0 + $0x50] sm:$0xff]
    %v226 = vld [vmem:[%s0 + $0x58] sm:$0xff]
    %v227 = vld [vmem:[%s0 + $0x60] sm:$0xff]
    %v228 = vld [vmem:[%s0 + $0x68] sm:$0xff]
    %v229 = vld [vmem:[%s0 + $0x70] sm:$0xff]
    %v230 = vld [vmem:[%s0 + $0x78] sm:$0xff]
    %v231 = vld [vmem:[%s1] sm:$0x1]
    %232 = vset.pattern.permute.xlu0 0
    %233 = vperm.xlu0 %232, %v215
    %v234 = vpop.permute.xlu0 %233
    %235 = vset.pattern.permute.xlu0 0
    %236 = vperm.xlu0 %235, %v216
    %v237 = vpop.permute.xlu0 %236
    %238 = vset.pattern.permute.xlu0 0
    %239 = vperm.xlu0 %238, %v217
    %v240 = vpop.permute.xlu0 %239
    %241 = vset.pattern.permute.xlu0 0
    %242 = vperm.xlu0 %241, %v218
    %v243 = vpop.permute.xlu0 %242
    %244 = vset.pattern.permute.xlu0 0
    %245 = vperm.xlu0 %244, %v219
    %v246 = vpop.permute.xlu0 %245
    %247 = vset.pattern.permute.xlu0 0
    %248 = vperm.xlu0 %247, %v220
    %v249 = vpop.permute.xlu0 %248
    %250 = vset.pattern.permute.xlu0 0
    %251 = vperm.xlu0 %250, %v221
    %v252 = vpop.permute.xlu0 %251
    %253 = vset.pattern.permute.xlu0 0
    %254 = vperm.xlu0 %253, %v222
    %v255 = vpop.permute.xlu0 %254
    %256 = vset.pattern.permute.xlu0 0
    %257 = vperm.xlu0 %256, %v223
    %v258 = vpop.permute.xlu0 %257
    %259 = vset.pattern.permute.xlu0 0
    %260 = vperm.xlu0 %259, %v224
    %v261 = vpop.permute.xlu0 %260
    %262 = vset.pattern.permute.xlu0 0
    %263 = vperm.xlu0 %262, %v225
    %v264 = vpop.permute.xlu0 %263
    %265 = vset.pattern.permute.xlu0 0
    %266 = vperm.xlu0 %265, %v226
    %v267 = vpop.permute.xlu0 %266
    %268 = vset.pattern.permute.xlu0 0
    %269 = vperm.xlu0 %268, %v227
    %v270 = vpop.permute.xlu0 %269
    %271 = vset.pattern.permute.xlu0 0
    %272 = vperm.xlu0 %271, %v228
    %v273 = vpop.permute.xlu0 %272
    %274 = vset.pattern.permute.xlu0 0
    %275 = vperm.xlu0 %274, %v229
    %v276 = vpop.permute.xlu0 %275
    %277 = vset.pattern.permute.xlu0 0
    %278 = vperm.xlu0 %277, %v230
    %v279 = vpop.permute.xlu0 %278
    %v280 = vperm.slane %v231, 0
    %vm281 = vcmp.eq.s32.totalorder %v234, %v280
    %vm282 = vcmp.eq.s32.totalorder %v237, %v280
    %vm283 = vcmp.eq.s32.totalorder %v240, %v280
    %vm284 = vcmp.eq.s32.totalorder %v243, %v280
    %vm285 = vcmp.eq.s32.totalorder %v246, %v280
    %vm286 = vcmp.eq.s32.totalorder %v249, %v280
    %vm287 = vcmp.eq.s32.totalorder %v252, %v280
    %vm288 = vcmp.eq.s32.totalorder %v255, %v280
    %vm289 = vcmp.eq.s32.totalorder %v258, %v280
    %vm290 = vcmp.eq.s32.totalorder %v261, %v280
    %vm291 = vcmp.eq.s32.totalorder %v264, %v280
    %vm292 = vcmp.eq.s32.totalorder %v267, %v280
    %vm293 = vcmp.eq.s32.totalorder %v270, %v280
    %vm294 = vcmp.eq.s32.totalorder %v273, %v280
    %vm295 = vcmp.eq.s32.totalorder %v276, %v280
    %vm296 = vcmp.eq.s32.totalorder %v279, %v280
    %s297 = smul.u32 0, 128
    %s298 = smul.u32 0, 128
    %s299 = sadd.s32 %s298, 128
    %p300 = scmp.lt.s32.totalorder %s297, %s299
    %s301 = sadd.s32 %s297, 128
    %p302 = scmp.lt.s32.totalorder %s298, %s301
    %p303 = pnand %p300, %p302
    %p304 = pneg %p303
    %p305 = por %p304, %p33
    // Predicated region
    $region26: #{tpu_custom_call.1} parent=1 // pred_check
      %p306 = pneg %p305
    $region27: #{tpu_custom_call.1} parent=1 // pred_check_branch
      %308 = sbr.rel (%p306) target = $region29
    $region28: #{tpu_custom_call.1} parent=1 // pred_region
      %v309 = vlaneseq
      %v310 = vshrl.u32 %v309, 7
      %v311 = vadd.s32 %v310, 8
      %v312 = vadd.s32 %v310, 16
      %v313 = vadd.s32 %v310, 24
      %v314 = vadd.s32 %v310, 32
      %v315 = vadd.s32 %v310, 40
      %v316 = vadd.s32 %v310, 48
      %v317 = vadd.s32 %v310, 56
      %v318 = vadd.s32 %v310, 64
      %v319 = vadd.s32 %v310, 72
      %v320 = vadd.s32 %v310, 80
      %v321 = vadd.s32 %v310, 88
      %v322 = vadd.s32 %v310, 96
      %v323 = vadd.s32 %v310, 104
      %v324 = vadd.s32 %v310, 112
      %v325 = vadd.s32 %v310, 120
      %v326 = vstv %s297
      %v327 = vadd.s32 %v326, %v310
      %v328 = vadd.s32 %v326, %v311
      %v329 = vadd.s32 %v326, %v312
      %v330 = vadd.s32 %v326, %v313
      %v331 = vadd.s32 %v326, %v314
      %v332 = vadd.s32 %v326, %v315
      %v333 = vadd.s32 %v326, %v316
      %v334 = vadd.s32 %v326, %v317
      %v335 = vadd.s32 %v326, %v318
      %v336 = vadd.s32 %v326, %v319
      %v337 = vadd.s32 %v326, %v320
      %v338 = vadd.s32 %v326, %v321
      %v339 = vadd.s32 %v326, %v322
      %v340 = vadd.s32 %v326, %v323
      %v341 = vadd.s32 %v326, %v324
      %v342 = vadd.s32 %v326, %v325
      %v343 = vlaneseq
      %v344 = vand.u32 %v343, 127
      %v345 = vstv %s298
      %v346 = vadd.s32 %v345, %v344
      %vm347 = vcmp.ne.s32.totalorder %v327, %v346
      %vm348 = vcmp.ne.s32.totalorder %v328, %v346
      %vm349 = vcmp.ne.s32.totalorder %v329, %v346
      %vm350 = vcmp.ne.s32.totalorder %v330, %v346
      %vm351 = vcmp.ne.s32.totalorder %v331, %v346
      %vm352 = vcmp.ne.s32.totalorder %v332, %v346
      %vm353 = vcmp.ne.s32.totalorder %v333, %v346
      %vm354 = vcmp.ne.s32.totalorder %v334, %v346
      %vm355 = vcmp.ne.s32.totalorder %v335, %v346
      %vm356 = vcmp.ne.s32.totalorder %v336, %v346
      %vm357 = vcmp.ne.s32.totalorder %v337, %v346
      %vm358 = vcmp.ne.s32.totalorder %v338, %v346
      %vm359 = vcmp.ne.s32.totalorder %v339, %v346
      %vm360 = vcmp.ne.s32.totalorder %v340, %v346
      %vm361 = vcmp.ne.s32.totalorder %v341, %v346
      %vm362 = vcmp.ne.s32.totalorder %v342, %v346
      %vm363 = vcmp.lt.s32.totalorder %v346, 16
      %vm364 = vmand %vm363, %vm347
      %vm365 = vmand %vm363, %vm348
      %vm366 = vmand %vm363, %vm349
      %vm367 = vmand %vm363, %vm350
      %vm368 = vmand %vm363, %vm351
      %vm369 = vmand %vm363, %vm352
      %vm370 = vmand %vm363, %vm353
      %vm371 = vmand %vm363, %vm354
      %vm372 = vmand %vm363, %vm355
      %vm373 = vmand %vm363, %vm356
      %vm374 = vmand %vm363, %vm357
      %vm375 = vmand %vm363, %vm358
      %vm376 = vmand %vm363, %vm359
      %vm377 = vmand %vm363, %vm360
      %vm378 = vmand %vm363, %vm361
      %vm379 = vmand %vm363, %vm362
      %v380 = vsel %vm363, %v199, -inf
      %v381 = vsel %vm363, %v200, -inf
      %v382 = vsel %vm363, %v201, -inf
      %v383 = vsel %vm363, %v202, -inf
      %v384 = vsel %vm363, %v203, -inf
      %v385 = vsel %vm363, %v204, -inf
      %v386 = vsel %vm363, %v205, -inf
      %v387 = vsel %vm363, %v206, -inf
      %v388 = vsel %vm363, %v207, -inf
      %v389 = vsel %vm363, %v208, -inf
      %v390 = vsel %vm363, %v209, -inf
      %v391 = vsel %vm363, %v210, -inf
      %v392 = vsel %vm363, %v211, -inf
      %v393 = vsel %vm363, %v212, -inf
      %v394 = vsel %vm363, %v213, -inf
      %v395 = vsel %vm363, %v214, -inf
      %396 = vmax.xlane.f32.xlu0 %v380
      %v397 = vpop.xlane.xlu0 %396
      %398 = vmax.xlane.f32.xlu0 %v381
      %v399 = vpop.xlane.xlu0 %398
      %400 = vmax.xlane.f32.xlu0 %v382
      %v401 = vpop.xlane.xlu0 %400
      %402 = vmax.xlane.f32.xlu0 %v383
      %v403 = vpop.xlane.xlu0 %402
      %404 = vmax.xlane.f32.xlu0 %v384
      %v405 = vpop.xlane.xlu0 %404
      %406 = vmax.xlane.f32.xlu0 %v385
      %v407 = vpop.xlane.xlu0 %406
      %408 = vmax.xlane.f32.xlu0 %v386
      %v409 = vpop.xlane.xlu0 %408
      %410 = vmax.xlane.f32.xlu0 %v387
      %v411 = vpop.xlane.xlu0 %410
      %412 = vmax.xlane.f32.xlu0 %v388
      %v413 = vpop.xlane.xlu0 %412
      %414 = vmax.xlane.f32.xlu0 %v389
      %v415 = vpop.xlane.xlu0 %414
      %416 = vmax.xlane.f32.xlu0 %v390
      %v417 = vpop.xlane.xlu0 %416
      %418 = vmax.xlane.f32.xlu0 %v391
      %v419 = vpop.xlane.xlu0 %418
      %420 = vmax.xlane.f32.xlu0 %v392
      %v421 = vpop.xlane.xlu0 %420
      %422 = vmax.xlane.f32.xlu0 %v393
      %v423 = vpop.xlane.xlu0 %422
      %424 = vmax.xlane.f32.xlu0 %v394
      %v425 = vpop.xlane.xlu0 %424
      %426 = vmax.xlane.f32.xlu0 %v395
      %v427 = vpop.xlane.xlu0 %426
      %vm428 = vmand %vm281, %vm364
      %vm429 = vmand %vm282, %vm365
      %vm430 = vmand %vm283, %vm366
      %vm431 = vmand %vm284, %vm367
      %vm432 = vmand %vm285, %vm368
      %vm433 = vmand %vm286, %vm369
      %vm434 = vmand %vm287, %vm370
      %vm435 = vmand %vm288, %vm371
      %vm436 = vmand %vm289, %vm372
      %vm437 = vmand %vm290, %vm373
      %vm438 = vmand %vm291, %vm374
      %vm439 = vmand %vm292, %vm375
      %vm440 = vmand %vm293, %vm376
      %vm441 = vmand %vm294, %vm377
      %vm442 = vmand %vm295, %vm378
      %vm443 = vmand %vm296, %vm379
      %v444 = vld [vmem:[#allocation2] sm:$0xff]
      %v445 = vld [vmem:[#allocation2 + $0x8] sm:$0xff]
      %v446 = vld [vmem:[#allocation2 + $0x10] sm:$0xff]
      %v447 = vld [vmem:[#allocation2 + $0x18] sm:$0xff]
      %v448 = vld [vmem:[#allocation2 + $0x20] sm:$0xff]
      %v449 = vld [vmem:[#allocation2 + $0x28] sm:$0xff]
      %v450 = vld [vmem:[#allocation2 + $0x30] sm:$0xff]
      %v451 = vld [vmem:[#allocation2 + $0x38] sm:$0xff]
      %v452 = vld [vmem:[#allocation2 + $0x40] sm:$0xff]
      %v453 = vld [vmem:[#allocation2 + $0x48] sm:$0xff]
      %v454 = vld [vmem:[#allocation2 + $0x50] sm:$0xff]
      %v455 = vld [vmem:[#allocation2 + $0x58] sm:$0xff]
      %v456 = vld [vmem:[#allocation2 + $0x60] sm:$0xff]
      %v457 = vld [vmem:[#allocation2 + $0x68] sm:$0xff]
      %v458 = vld [vmem:[#allocation2 + $0x70] sm:$0xff]
      %v459 = vld [vmem:[#allocation2 + $0x78] sm:$0xff]
      %v460 = vmax.f32 %v444, %v397
      %v461 = vmax.f32 %v445, %v399
      %v462 = vmax.f32 %v446, %v401
      %v463 = vmax.f32 %v447, %v403
      %v464 = vmax.f32 %v448, %v405
      %v465 = vmax.f32 %v449, %v407
      %v466 = vmax.f32 %v450, %v409
      %v467 = vmax.f32 %v451, %v411
      %v468 = vmax.f32 %v452, %v413
      %v469 = vmax.f32 %v453, %v415
      %v470 = vmax.f32 %v454, %v417
      %v471 = vmax.f32 %v455, %v419
      %v472 = vmax.f32 %v456, %v421
      %v473 = vmax.f32 %v457, %v423
      %v474 = vmax.f32 %v458, %v425
      %v475 = vmax.f32 %v459, %v427
      %477 = vset.pattern.permute.xlu0 0
      %478 = vperm.xlu0 %477, %v460
      %v479 = vpop.permute.xlu0 %478
      %482 = vset.pattern.permute.xlu0 0
      %483 = vperm.xlu0 %482, %v461
      %v484 = vpop.permute.xlu0 %483
      %487 = vset.pattern.permute.xlu0 0
      %488 = vperm.xlu0 %487, %v462
      %v489 = vpop.permute.xlu0 %488
      %492 = vset.pattern.permute.xlu0 0
      %493 = vperm.xlu0 %492, %v463
      %v494 = vpop.permute.xlu0 %493
      %497 = vset.pattern.permute.xlu0 0
      %498 = vperm.xlu0 %497, %v464
      %v499 = vpop.permute.xlu0 %498
      %502 = vset.pattern.permute.xlu0 0
      %503 = vperm.xlu0 %502, %v465
      %v504 = vpop.permute.xlu0 %503
      %507 = vset.pattern.permute.xlu0 0
      %508 = vperm.xlu0 %507, %v466
      %v509 = vpop.permute.xlu0 %508
      %512 = vset.pattern.permute.xlu0 0
      %513 = vperm.xlu0 %512, %v467
      %v514 = vpop.permute.xlu0 %513
      %517 = vset.pattern.permute.xlu0 0
      %518 = vperm.xlu0 %517, %v468
      %v519 = vpop.permute.xlu0 %518
      %522 = vset.pattern.permute.xlu0 0
      %523 = vperm.xlu0 %522, %v469
      %v524 = vpop.permute.xlu0 %523
      %527 = vset.pattern.permute.xlu0 0
      %528 = vperm.xlu0 %527, %v470
      %v529 = vpop.permute.xlu0 %528
      %532 = vset.pattern.permute.xlu0 0
      %533 = vperm.xlu0 %532, %v471
      %v534 = vpop.permute.xlu0 %533
      %537 = vset.pattern.permute.xlu0 0
      %538 = vperm.xlu0 %537, %v472
      %v539 = vpop.permute.xlu0 %538
      %542 = vset.pattern.permute.xlu0 0
      %543 = vperm.xlu0 %542, %v473
      %v544 = vpop.permute.xlu0 %543
      %547 = vset.pattern.permute.xlu0 0
      %548 = vperm.xlu0 %547, %v474
      %v549 = vpop.permute.xlu0 %548
      %552 = vset.pattern.permute.xlu0 0
      %553 = vperm.xlu0 %552, %v475
      %v554 = vpop.permute.xlu0 %553
      %v556 = vsub.f32 %v199, %v479
      %v557 = vsub.f32 %v200, %v484
      %v558 = vsub.f32 %v201, %v489
      %v559 = vsub.f32 %v202, %v494
      %v560 = vsub.f32 %v203, %v499
      %v561 = vsub.f32 %v204, %v504
      %v562 = vsub.f32 %v205, %v509
      %v563 = vsub.f32 %v206, %v514
      %v564 = vsub.f32 %v207, %v519
      %v565 = vsub.f32 %v208, %v524
      %v566 = vsub.f32 %v209, %v529
      %v567 = vsub.f32 %v210, %v534
      %v568 = vsub.f32 %v211, %v539
      %v569 = vsub.f32 %v212, %v544
      %v570 = vsub.f32 %v213, %v549
      %v571 = vsub.f32 %v214, %v554
      %v572 = vmul.f32 %v556, 1.442695
      %v573 = vpow.pop %v572
      %v574 = vmul.f32 %v557, 1.442695
      %v575 = vpow.pop %v574
      %v576 = vmul.f32 %v558, 1.442695
      %v577 = vpow.pop %v576
      %v578 = vmul.f32 %v559, 1.442695
      %v579 = vpow.pop %v578
      %v580 = vmul.f32 %v560, 1.442695
      %v581 = vpow.pop %v580
      %v582 = vmul.f32 %v561, 1.442695
      %v583 = vpow.pop %v582
      %v584 = vmul.f32 %v562, 1.442695
      %v585 = vpow.pop %v584
      %v586 = vmul.f32 %v563, 1.442695
      %v587 = vpow.pop %v586
      %v588 = vmul.f32 %v564, 1.442695
      %v589 = vpow.pop %v588
      %v590 = vmul.f32 %v565, 1.442695
      %v591 = vpow.pop %v590
      %v592 = vmul.f32 %v566, 1.442695
      %v593 = vpow.pop %v592
      %v594 = vmul.f32 %v567, 1.442695
      %v595 = vpow.pop %v594
      %v596 = vmul.f32 %v568, 1.442695
      %v597 = vpow.pop %v596
      %v598 = vmul.f32 %v569, 1.442695
      %v599 = vpow.pop %v598
      %v600 = vmul.f32 %v570, 1.442695
      %v601 = vpow.pop %v600
      %v602 = vmul.f32 %v571, 1.442695
      %v603 = vpow.pop %v602
      %v604 = vsel %vm364, %v573, 0.0
      %v605 = vsel %vm365, %v575, 0.0
      %v606 = vsel %vm366, %v577, 0.0
      %v607 = vsel %vm367, %v579, 0.0
      %v608 = vsel %vm368, %v581, 0.0
      %v609 = vsel %vm369, %v583, 0.0
      %v610 = vsel %vm370, %v585, 0.0
      %v611 = vsel %vm371, %v587, 0.0
      %v612 = vsel %vm372, %v589, 0.0
      %v613 = vsel %vm373, %v591, 0.0
      %v614 = vsel %vm374, %v593, 0.0
      %v615 = vsel %vm375, %v595, 0.0
      %v616 = vsel %vm376, %v597, 0.0
      %v617 = vsel %vm377, %v599, 0.0
      %v618 = vsel %vm378, %v601, 0.0
      %v619 = vsel %vm379, %v603, 0.0
      %v620 = vld [vmem:[#allocation3] sm:$0xff]
      %v621 = vld [vmem:[#allocation3 + $0x8] sm:$0xff]
      %v622 = vld [vmem:[#allocation3 + $0x10] sm:$0xff]
      %v623 = vld [vmem:[#allocation3 + $0x18] sm:$0xff]
      %v624 = vld [vmem:[#allocation3 + $0x20] sm:$0xff]
      %v625 = vld [vmem:[#allocation3 + $0x28] sm:$0xff]
      %v626 = vld [vmem:[#allocation3 + $0x30] sm:$0xff]
      %v627 = vld [vmem:[#allocation3 + $0x38] sm:$0xff]
      %v628 = vld [vmem:[#allocation3 + $0x40] sm:$0xff]
      %v629 = vld [vmem:[#allocation3 + $0x48] sm:$0xff]
      %v630 = vld [vmem:[#allocation3 + $0x50] sm:$0xff]
      %v631 = vld [vmem:[#allocation3 + $0x58] sm:$0xff]
      %v632 = vld [vmem:[#allocation3 + $0x60] sm:$0xff]
      %v633 = vld [vmem:[#allocation3 + $0x68] sm:$0xff]
      %v634 = vld [vmem:[#allocation3 + $0x70] sm:$0xff]
      %v635 = vld [vmem:[#allocation3 + $0x78] sm:$0xff]
      %v636 = vsub.f32 %v444, %v460
      %v637 = vsub.f32 %v445, %v461
      %v638 = vsub.f32 %v446, %v462
      %v639 = vsub.f32 %v447, %v463
      %v640 = vsub.f32 %v448, %v464
      %v641 = vsub.f32 %v449, %v465
      %v642 = vsub.f32 %v450, %v466
      %v643 = vsub.f32 %v451, %v467
      %v644 = vsub.f32 %v452, %v468
      %v645 = vsub.f32 %v453, %v469
      %v646 = vsub.f32 %v454, %v470
      %v647 = vsub.f32 %v455, %v471
      %v648 = vsub.f32 %v456, %v472
      %v649 = vsub.f32 %v457, %v473
      %v650 = vsub.f32 %v458, %v474
      %v651 = vsub.f32 %v459, %v475
      %v652 = vmul.f32 %v636, 1.442695
      %v653 = vpow.pop %v652
      %v654 = vmul.f32 %v637, 1.442695
      %v655 = vpow.pop %v654
      %v656 = vmul.f32 %v638, 1.442695
      %v657 = vpow.pop %v656
      %v658 = vmul.f32 %v639, 1.442695
      %v659 = vpow.pop %v658
      %v660 = vmul.f32 %v640, 1.442695
      %v661 = vpow.pop %v660
      %v662 = vmul.f32 %v641, 1.442695
      %v663 = vpow.pop %v662
      %v664 = vmul.f32 %v642, 1.442695
      %v665 = vpow.pop %v664
      %v666 = vmul.f32 %v643, 1.442695
      %v667 = vpow.pop %v666
      %v668 = vmul.f32 %v644, 1.442695
      %v669 = vpow.pop %v668
      %v670 = vmul.f32 %v645, 1.442695
      %v671 = vpow.pop %v670
      %v672 = vmul.f32 %v646, 1.442695
      %v673 = vpow.pop %v672
      %v674 = vmul.f32 %v647, 1.442695
      %v675 = vpow.pop %v674
      %v676 = vmul.f32 %v648, 1.442695
      %v677 = vpow.pop %v676
      %v678 = vmul.f32 %v649, 1.442695
      %v679 = vpow.pop %v678
      %v680 = vmul.f32 %v650, 1.442695
      %v681 = vpow.pop %v680
      %v682 = vmul.f32 %v651, 1.442695
      %v683 = vpow.pop %v682
      %v684 = vmul.f32 %v620, %v653
      %v685 = vmul.f32 %v621, %v655
      %v686 = vmul.f32 %v622, %v657
      %v687 = vmul.f32 %v623, %v659
      %v688 = vmul.f32 %v624, %v661
      %v689 = vmul.f32 %v625, %v663
      %v690 = vmul.f32 %v626, %v665
      %v691 = vmul.f32 %v627, %v667
      %v692 = vmul.f32 %v628, %v669
      %v693 = vmul.f32 %v629, %v671
      %v694 = vmul.f32 %v630, %v673
      %v695 = vmul.f32 %v631, %v675
      %v696 = vmul.f32 %v632, %v677
      %v697 = vmul.f32 %v633, %v679
      %v698 = vmul.f32 %v634, %v681
      %v699 = vmul.f32 %v635, %v683
      %700 = vadd.xlane.f32.xlu0 %v604
      %v701 = vpop.xlane.xlu0 %700
      %702 = vadd.xlane.f32.xlu0 %v605
      %v703 = vpop.xlane.xlu0 %702
      %704 = vadd.xlane.f32.xlu0 %v606
      %v705 = vpop.xlane.xlu0 %704
      %706 = vadd.xlane.f32.xlu0 %v607
      %v707 = vpop.xlane.xlu0 %706
      %708 = vadd.xlane.f32.xlu0 %v608
      %v709 = vpop.xlane.xlu0 %708
      %710 = vadd.xlane.f32.xlu0 %v609
      %v711 = vpop.xlane.xlu0 %710
      %712 = vadd.xlane.f32.xlu0 %v610
      %v713 = vpop.xlane.xlu0 %712
      %714 = vadd.xlane.f32.xlu0 %v611
      %v715 = vpop.xlane.xlu0 %714
      %716 = vadd.xlane.f32.xlu0 %v612
      %v717 = vpop.xlane.xlu0 %716
      %718 = vadd.xlane.f32.xlu0 %v613
      %v719 = vpop.xlane.xlu0 %718
      %720 = vadd.xlane.f32.xlu0 %v614
      %v721 = vpop.xlane.xlu0 %720
      %722 = vadd.xlane.f32.xlu0 %v615
      %v723 = vpop.xlane.xlu0 %722
      %724 = vadd.xlane.f32.xlu0 %v616
      %v725 = vpop.xlane.xlu0 %724
      %726 = vadd.xlane.f32.xlu0 %v617
      %v727 = vpop.xlane.xlu0 %726
      %728 = vadd.xlane.f32.xlu0 %v618
      %v729 = vpop.xlane.xlu0 %728
      %730 = vadd.xlane.f32.xlu0 %v619
      %v731 = vpop.xlane.xlu0 %730
      %v732 = vadd.f32 %v684, %v701
      %v733 = vadd.f32 %v685, %v703
      %v734 = vadd.f32 %v686, %v705
      %v735 = vadd.f32 %v687, %v707
      %v736 = vadd.f32 %v688, %v709
      %v737 = vadd.f32 %v689, %v711
      %v738 = vadd.f32 %v690, %v713
      %v739 = vadd.f32 %v691, %v715
      %v740 = vadd.f32 %v692, %v717
      %v741 = vadd.f32 %v693, %v719
      %v742 = vadd.f32 %v694, %v721
      %v743 = vadd.f32 %v695, %v723
      %v744 = vadd.f32 %v696, %v725
      %v745 = vadd.f32 %v697, %v727
      %v746 = vadd.f32 %v698, %v729
      %v747 = vadd.f32 %v699, %v731
      %vm748 = vcmask 7168
      %749 = vst.msk [vmem:[#allocation3] sm:$0xff] %vm748, %v732
      %750 = vst.msk [vmem:[#allocation3 + $0x8] sm:$0xff] %vm748, %v733
      %751 = vst.msk [vmem:[#allocation3 + $0x10] sm:$0xff] %vm748, %v734
      %752 = vst.msk [vmem:[#allocation3 + $0x18] sm:$0xff] %vm748, %v735
      %753 = vst.msk [vmem:[#allocation3 + $0x20] sm:$0xff] %vm748, %v736
      %754 = vst.msk [vmem:[#allocation3 + $0x28] sm:$0xff] %vm748, %v737
      %755 = vst.msk [vmem:[#allocation3 + $0x30] sm:$0xff] %vm748, %v738
      %756 = vst.msk [vmem:[#allocation3 + $0x38] sm:$0xff] %vm748, %v739
      %757 = vst.msk [vmem:[#allocation3 + $0x40] sm:$0xff] %vm748, %v740
      %758 = vst.msk [vmem:[#allocation3 + $0x48] sm:$0xff] %vm748, %v741
      %759 = vst.msk [vmem:[#allocation3 + $0x50] sm:$0xff] %vm748, %v742
      %760 = vst.msk [vmem:[#allocation3 + $0x58] sm:$0xff] %vm748, %v743
      %761 = vst.msk [vmem:[#allocation3 + $0x60] sm:$0xff] %vm748, %v744
      %762 = vst.msk [vmem:[#allocation3 + $0x68] sm:$0xff] %vm748, %v745
      %763 = vst.msk [vmem:[#allocation3 + $0x70] sm:$0xff] %vm748, %v746
      %764 = vst.msk [vmem:[#allocation3 + $0x78] sm:$0xff] %vm748, %v747
      %765 = vst.msk [vmem:[#allocation2] sm:$0xff] %vm748, %v460
      %766 = vst.msk [vmem:[#allocation2 + $0x8] sm:$0xff] %vm748, %v461
      %767 = vst.msk [vmem:[#allocation2 + $0x10] sm:$0xff] %vm748, %v462
      %768 = vst.msk [vmem:[#allocation2 + $0x18] sm:$0xff] %vm748, %v463
      %769 = vst.msk [vmem:[#allocation2 + $0x20] sm:$0xff] %vm748, %v464
      %770 = vst.msk [vmem:[#allocation2 + $0x28] sm:$0xff] %vm748, %v465
      %771 = vst.msk [vmem:[#allocation2 + $0x30] sm:$0xff] %vm748, %v466
      %772 = vst.msk [vmem:[#allocation2 + $0x38] sm:$0xff] %vm748, %v467
      %773 = vst.msk [vmem:[#allocation2 + $0x40] sm:$0xff] %vm748, %v468
      %774 = vst.msk [vmem:[#allocation2 + $0x48] sm:$0xff] %vm748, %v469
      %775 = vst.msk [vmem:[#allocation2 + $0x50] sm:$0xff] %vm748, %v470
      %776 = vst.msk [vmem:[#allocation2 + $0x58] sm:$0xff] %vm748, %v471
      %777 = vst.msk [vmem:[#allocation2 + $0x60] sm:$0xff] %vm748, %v472
      %778 = vst.msk [vmem:[#allocation2 + $0x68] sm:$0xff] %vm748, %v473
      %779 = vst.msk [vmem:[#allocation2 + $0x70] sm:$0xff] %vm748, %v474
      %780 = vst.msk [vmem:[#allocation2 + $0x78] sm:$0xff] %vm748, %v475
      %v781 = vld [vmem:[#allocation4] sm:$0xff]
      %v782 = vld [vmem:[#allocation4 + $0x8] sm:$0xff]
      %v783 = vld [vmem:[#allocation4 + $0x10] sm:$0xff]
      %v784 = vld [vmem:[#allocation4 + $0x18] sm:$0xff]
      %v785 = vld [vmem:[#allocation4 + $0x20] sm:$0xff]
      %v786 = vld [vmem:[#allocation4 + $0x28] sm:$0xff]
      %v787 = vld [vmem:[#allocation4 + $0x30] sm:$0xff]
      %v788 = vld [vmem:[#allocation4 + $0x38] sm:$0xff]
      %v789 = vld [vmem:[#allocation4 + $0x40] sm:$0xff]
      %v790 = vld [vmem:[#allocation4 + $0x48] sm:$0xff]
      %v791 = vld [vmem:[#allocation4 + $0x50] sm:$0xff]
      %v792 = vld [vmem:[#allocation4 + $0x58] sm:$0xff]
      %v793 = vld [vmem:[#allocation4 + $0x60] sm:$0xff]
      %v794 = vld [vmem:[#allocation4 + $0x68] sm:$0xff]
      %v795 = vld [vmem:[#allocation4 + $0x70] sm:$0xff]
      %v796 = vld [vmem:[#allocation4 + $0x78] sm:$0xff]
      %v797 = vsel %vm428, %v199, 0.0
      %v798 = vsel %vm429, %v200, 0.0
      %v799 = vsel %vm430, %v201, 0.0
      %v800 = vsel %vm431, %v202, 0.0
      %v801 = vsel %vm432, %v203, 0.0
      %v802 = vsel %vm433, %v204, 0.0
      %v803 = vsel %vm434, %v205, 0.0
      %v804 = vsel %vm435, %v206, 0.0
      %v805 = vsel %vm436, %v207, 0.0
      %v806 = vsel %vm437, %v208, 0.0
      %v807 = vsel %vm438, %v209, 0.0
      %v808 = vsel %vm439, %v210, 0.0
      %v809 = vsel %vm440, %v211, 0.0
      %v810 = vsel %vm441, %v212, 0.0
      %v811 = vsel %vm442, %v213, 0.0
      %v812 = vsel %vm443, %v214, 0.0
      %813 = vadd.xlane.f32.xlu0 %v797
      %v814 = vpop.xlane.xlu0 %813
      %815 = vadd.xlane.f32.xlu0 %v798
      %v816 = vpop.xlane.xlu0 %815
      %817 = vadd.xlane.f32.xlu0 %v799
      %v818 = vpop.xlane.xlu0 %817
      %819 = vadd.xlane.f32.xlu0 %v800
      %v820 = vpop.xlane.xlu0 %819
      %821 = vadd.xlane.f32.xlu0 %v801
      %v822 = vpop.xlane.xlu0 %821
      %823 = vadd.xlane.f32.xlu0 %v802
      %v824 = vpop.xlane.xlu0 %823
      %825 = vadd.xlane.f32.xlu0 %v803
      %v826 = vpop.xlane.xlu0 %825
      %827 = vadd.xlane.f32.xlu0 %v804
      %v828 = vpop.xlane.xlu0 %827
      %829 = vadd.xlane.f32.xlu0 %v805
      %v830 = vpop.xlane.xlu0 %829
      %831 = vadd.xlane.f32.xlu0 %v806
      %v832 = vpop.xlane.xlu0 %831
      %833 = vadd.xlane.f32.xlu0 %v807
      %v834 = vpop.xlane.xlu0 %833
      %835 = vadd.xlane.f32.xlu0 %v808
      %v836 = vpop.xlane.xlu0 %835
      %837 = vadd.xlane.f32.xlu0 %v809
      %v838 = vpop.xlane.xlu0 %837
      %839 = vadd.xlane.f32.xlu0 %v810
      %v840 = vpop.xlane.xlu0 %839
      %841 = vadd.xlane.f32.xlu0 %v811
      %v842 = vpop.xlane.xlu0 %841
      %843 = vadd.xlane.f32.xlu0 %v812
      %v844 = vpop.xlane.xlu0 %843
      %v845 = vadd.f32 %v781, %v814
      %v846 = vadd.f32 %v782, %v816
      %v847 = vadd.f32 %v783, %v818
      %v848 = vadd.f32 %v784, %v820
      %v849 = vadd.f32 %v785, %v822
      %v850 = vadd.f32 %v786, %v824
      %v851 = vadd.f32 %v787, %v826
      %v852 = vadd.f32 %v788, %v828
      %v853 = vadd.f32 %v789, %v830
      %v854 = vadd.f32 %v790, %v832
      %v855 = vadd.f32 %v791, %v834
      %v856 = vadd.f32 %v792, %v836
      %v857 = vadd.f32 %v793, %v838
      %v858 = vadd.f32 %v794, %v840
      %v859 = vadd.f32 %v795, %v842
      %v860 = vadd.f32 %v796, %v844
      %861 = vst.msk [vmem:[#allocation4] sm:$0xff] %vm748, %v845
      %862 = vst.msk [vmem:[#allocation4 + $0x8] sm:$0xff] %vm748, %v846
      %863 = vst.msk [vmem:[#allocation4 + $0x10] sm:$0xff] %vm748, %v847
      %864 = vst.msk [vmem:[#allocation4 + $0x18] sm:$0xff] %vm748, %v848
      %865 = vst.msk [vmem:[#allocation4 + $0x20] sm:$0xff] %vm748, %v849
      %866 = vst.msk [vmem:[#allocation4 + $0x28] sm:$0xff] %vm748, %v850
      %867 = vst.msk [vmem:[#allocation4 + $0x30] sm:$0xff] %vm748, %v851
      %868 = vst.msk [vmem:[#allocation4 + $0x38] sm:$0xff] %vm748, %v852
      %869 = vst.msk [vmem:[#allocation4 + $0x40] sm:$0xff] %vm748, %v853
      %870 = vst.msk [vmem:[#allocation4 + $0x48] sm:$0xff] %vm748, %v854
      %871 = vst.msk [vmem:[#allocation4 + $0x50] sm:$0xff] %vm748, %v855
      %872 = vst.msk [vmem:[#allocation4 + $0x58] sm:$0xff] %vm748, %v856
      %873 = vst.msk [vmem:[#allocation4 + $0x60] sm:$0xff] %vm748, %v857
      %874 = vst.msk [vmem:[#allocation4 + $0x68] sm:$0xff] %vm748, %v858
      %875 = vst.msk [vmem:[#allocation4 + $0x70] sm:$0xff] %vm748, %v859
      %876 = vst.msk [vmem:[#allocation4 + $0x78] sm:$0xff] %vm748, %v860
      %v877 = vld [vmem:[#allocation5] sm:$0xff]
      %v878 = vld [vmem:[#allocation5 + $0x8] sm:$0xff]
      %v879 = vld [vmem:[#allocation5 + $0x10] sm:$0xff]
      %v880 = vld [vmem:[#allocation5 + $0x18] sm:$0xff]
      %v881 = vld [vmem:[#allocation5 + $0x20] sm:$0xff]
      %v882 = vld [vmem:[#allocation5 + $0x28] sm:$0xff]
      %v883 = vld [vmem:[#allocation5 + $0x30] sm:$0xff]
      %v884 = vld [vmem:[#allocation5 + $0x38] sm:$0xff]
      %v885 = vld [vmem:[#allocation5 + $0x40] sm:$0xff]
      %v886 = vld [vmem:[#allocation5 + $0x48] sm:$0xff]
      %v887 = vld [vmem:[#allocation5 + $0x50] sm:$0xff]
      %v888 = vld [vmem:[#allocation5 + $0x58] sm:$0xff]
      %v889 = vld [vmem:[#allocation5 + $0x60] sm:$0xff]
      %v890 = vld [vmem:[#allocation5 + $0x68] sm:$0xff]
      %v891 = vld [vmem:[#allocation5 + $0x70] sm:$0xff]
      %v892 = vld [vmem:[#allocation5 + $0x78] sm:$0xff]
      %v893 = vsel %vm428, 1.0, 0.0
      %v894 = vsel %vm429, 1.0, 0.0
      %v895 = vsel %vm430, 1.0, 0.0
      %v896 = vsel %vm431, 1.0, 0.0
      %v897 = vsel %vm432, 1.0, 0.0
      %v898 = vsel %vm433, 1.0, 0.0
      %v899 = vsel %vm434, 1.0, 0.0
      %v900 = vsel %vm435, 1.0, 0.0
      %v901 = vsel %vm436, 1.0, 0.0
      %v902 = vsel %vm437, 1.0, 0.0
      %v903 = vsel %vm438, 1.0, 0.0
      %v904 = vsel %vm439, 1.0, 0.0
      %v905 = vsel %vm440, 1.0, 0.0
      %v906 = vsel %vm441, 1.0, 0.0
      %v907 = vsel %vm442, 1.0, 0.0
      %v908 = vsel %vm443, 1.0, 0.0
      %909 = vadd.xlane.f32.xlu0 %v893
      %v910 = vpop.xlane.xlu0 %909
      %911 = vadd.xlane.f32.xlu0 %v894
      %v912 = vpop.xlane.xlu0 %911
      %913 = vadd.xlane.f32.xlu0 %v895
      %v914 = vpop.xlane.xlu0 %913
      %915 = vadd.xlane.f32.xlu0 %v896
      %v916 = vpop.xlane.xlu0 %915
      %917 = vadd.xlane.f32.xlu0 %v897
      %v918 = vpop.xlane.xlu0 %917
      %919 = vadd.xlane.f32.xlu0 %v898
      %v920 = vpop.xlane.xlu0 %919
      %921 = vadd.xlane.f32.xlu0 %v899
      %v922 = vpop.xlane.xlu0 %921
      %923 = vadd.xlane.f32.xlu0 %v900
      %v924 = vpop.xlane.xlu0 %923
      %925 = vadd.xlane.f32.xlu0 %v901
      %v926 = vpop.xlane.xlu0 %925
      %927 = vadd.xlane.f32.xlu0 %v902
      %v928 = vpop.xlane.xlu0 %927
      %929 = vadd.xlane.f32.xlu0 %v903
      %v930 = vpop.xlane.xlu0 %929
      %931 = vadd.xlane.f32.xlu0 %v904
      %v932 = vpop.xlane.xlu0 %931
      %933 = vadd.xlane.f32.xlu0 %v905
      %v934 = vpop.xlane.xlu0 %933
      %935 = vadd.xlane.f32.xlu0 %v906
      %v936 = vpop.xlane.xlu0 %935
      %937 = vadd.xlane.f32.xlu0 %v907
      %v938 = vpop.xlane.xlu0 %937
      %939 = vadd.xlane.f32.xlu0 %v908
      %v940 = vpop.xlane.xlu0 %939
      %v941 = vadd.f32 %v877, %v910
      %v942 = vadd.f32 %v878, %v912
      %v943 = vadd.f32 %v879, %v914
      %v944 = vadd.f32 %v880, %v916
      %v945 = vadd.f32 %v881, %v918
      %v946 = vadd.f32 %v882, %v920
      %v947 = vadd.f32 %v883, %v922
      %v948 = vadd.f32 %v884, %v924
      %v949 = vadd.f32 %v885, %v926
      %v950 = vadd.f32 %v886, %v928
      %v951 = vadd.f32 %v887, %v930
      %v952 = vadd.f32 %v888, %v932
      %v953 = vadd.f32 %v889, %v934
      %v954 = vadd.f32 %v890, %v936
      %v955 = vadd.f32 %v891, %v938
      %v956 = vadd.f32 %v892, %v940
      %957 = vst.msk [vmem:[#allocation5] sm:$0xff] %vm748, %v941
      %958 = vst.msk [vmem:[#allocation5 + $0x8] sm:$0xff] %vm748, %v942
      %959 = vst.msk [vmem:[#allocation5 + $0x10] sm:$0xff] %vm748, %v943
      %960 = vst.msk [vmem:[#allocation5 + $0x18] sm:$0xff] %vm748, %v944
      %961 = vst.msk [vmem:[#allocation5 + $0x20] sm:$0xff] %vm748, %v945
      %962 = vst.msk [vmem:[#allocation5 + $0x28] sm:$0xff] %vm748, %v946
      %963 = vst.msk [vmem:[#allocation5 + $0x30] sm:$0xff] %vm748, %v947
      %964 = vst.msk [vmem:[#allocation5 + $0x38] sm:$0xff] %vm748, %v948
      %965 = vst.msk [vmem:[#allocation5 + $0x40] sm:$0xff] %vm748, %v949
      %966 = vst.msk [vmem:[#allocation5 + $0x48] sm:$0xff] %vm748, %v950
      %967 = vst.msk [vmem:[#allocation5 + $0x50] sm:$0xff] %vm748, %v951
      %968 = vst.msk [vmem:[#allocation5 + $0x58] sm:$0xff] %vm748, %v952
      %969 = vst.msk [vmem:[#allocation5 + $0x60] sm:$0xff] %vm748, %v953
      %970 = vst.msk [vmem:[#allocation5 + $0x68] sm:$0xff] %vm748, %v954
      %971 = vst.msk [vmem:[#allocation5 + $0x70] sm:$0xff] %vm748, %v955
      %972 = vst.msk [vmem:[#allocation5 + $0x78] sm:$0xff] %vm748, %v956
    $region29: #{tpu_custom_call.1} parent=1 // pred_fallthru
      _
    %p973 = pneg %p305
    // Predicated region
    $region30: #{tpu_custom_call.1} parent=1 // pred_check
      _
    $region31: #{tpu_custom_call.1} parent=1 // pred_check_branch
      %975 = sbr.rel (%p305) target = $region33
    $region32: #{tpu_custom_call.1} parent=1 // pred_region
      %976 = vmax.xlane.f32.xlu0 %v199
      %v977 = vpop.xlane.xlu0 %976
      %978 = vmax.xlane.f32.xlu0 %v200
      %v979 = vpop.xlane.xlu0 %978
      %980 = vmax.xlane.f32.xlu0 %v201
      %v981 = vpop.xlane.xlu0 %980
      %982 = vmax.xlane.f32.xlu0 %v202
      %v983 = vpop.xlane.xlu0 %982
      %984 = vmax.xlane.f32.xlu0 %v203
      %v985 = vpop.xlane.xlu0 %984
      %986 = vmax.xlane.f32.xlu0 %v204
      %v987 = vpop.xlane.xlu0 %986
      %988 = vmax.xlane.f32.xlu0 %v205
      %v989 = vpop.xlane.xlu0 %988
      %990 = vmax.xlane.f32.xlu0 %v206
      %v991 = vpop.xlane.xlu0 %990
      %992 = vmax.xlane.f32.xlu0 %v207
      %v993 = vpop.xlane.xlu0 %992
      %994 = vmax.xlane.f32.xlu0 %v208
      %v995 = vpop.xlane.xlu0 %994
      %996 = vmax.xlane.f32.xlu0 %v209
      %v997 = vpop.xlane.xlu0 %996
      %998 = vmax.xlane.f32.xlu0 %v210
      %v999 = vpop.xlane.xlu0 %998
      %1000 = vmax.xlane.f32.xlu0 %v211
      %v1001 = vpop.xlane.xlu0 %1000
      %1002 = vmax.xlane.f32.xlu0 %v212
      %v1003 = vpop.xlane.xlu0 %1002
      %1004 = vmax.xlane.f32.xlu0 %v213
      %v1005 = vpop.xlane.xlu0 %1004
      %1006 = vmax.xlane.f32.xlu0 %v214
      %v1007 = vpop.xlane.xlu0 %1006
      %v1008 = vld [vmem:[#allocation2] sm:$0xff]
      %v1009 = vld [vmem:[#allocation2 + $0x8] sm:$0xff]
      %v1010 = vld [vmem:[#allocation2 + $0x10] sm:$0xff]
      %v1011 = vld [vmem:[#allocation2 + $0x18] sm:$0xff]
      %v1012 = vld [vmem:[#allocation2 + $0x20] sm:$0xff]
      %v1013 = vld [vmem:[#allocation2 + $0x28] sm:$0xff]
      %v1014 = vld [vmem:[#allocation2 + $0x30] sm:$0xff]
      %v1015 = vld [vmem:[#allocation2 + $0x38] sm:$0xff]
      %v1016 = vld [vmem:[#allocation2 + $0x40] sm:$0xff]
      %v1017 = vld [vmem:[#allocation2 + $0x48] sm:$0xff]
      %v1018 = vld [vmem:[#allocation2 + $0x50] sm:$0xff]
      %v1019 = vld [vmem:[#allocation2 + $0x58] sm:$0xff]
      %v1020 = vld [vmem:[#allocation2 + $0x60] sm:$0xff]
      %v1021 = vld [vmem:[#allocation2 + $0x68] sm:$0xff]
      %v1022 = vld [vmem:[#allocation2 + $0x70] sm:$0xff]
      %v1023 = vld [vmem:[#allocation2 + $0x78] sm:$0xff]
      %v1024 = vmax.f32 %v1008, %v977
      %v1025 = vmax.f32 %v1009, %v979
      %v1026 = vmax.f32 %v1010, %v981
      %v1027 = vmax.f32 %v1011, %v983
      %v1028 = vmax.f32 %v1012, %v985
      %v1029 = vmax.f32 %v1013, %v987
      %v1030 = vmax.f32 %v1014, %v989
      %v1031 = vmax.f32 %v1015, %v991
      %v1032 = vmax.f32 %v1016, %v993
      %v1033 = vmax.f32 %v1017, %v995
      %v1034 = vmax.f32 %v1018, %v997
      %v1035 = vmax.f32 %v1019, %v999
      %v1036 = vmax.f32 %v1020, %v1001
      %v1037 = vmax.f32 %v1021, %v1003
      %v1038 = vmax.f32 %v1022, %v1005
      %v1039 = vmax.f32 %v1023, %v1007
      %1041 = vset.pattern.permute.xlu0 0
      %1042 = vperm.xlu0 %1041, %v1024
      %v1043 = vpop.permute.xlu0 %1042
      %1046 = vset.pattern.permute.xlu0 0
      %1047 = vperm.xlu0 %1046, %v1025
      %v1048 = vpop.permute.xlu0 %1047
      %1051 = vset.pattern.permute.xlu0 0
      %1052 = vperm.xlu0 %1051, %v1026
      %v1053 = vpop.permute.xlu0 %1052
      %1056 = vset.pattern.permute.xlu0 0
      %1057 = vperm.xlu0 %1056, %v1027
      %v1058 = vpop.permute.xlu0 %1057
      %1061 = vset.pattern.permute.xlu0 0
      %1062 = vperm.xlu0 %1061, %v1028
      %v1063 = vpop.permute.xlu0 %1062
      %1066 = vset.pattern.permute.xlu0 0
      %1067 = vperm.xlu0 %1066, %v1029
      %v1068 = vpop.permute.xlu0 %1067
      %1071 = vset.pattern.permute.xlu0 0
      %1072 = vperm.xlu0 %1071, %v1030
      %v1073 = vpop.permute.xlu0 %1072
      %1076 = vset.pattern.permute.xlu0 0
      %1077 = vperm.xlu0 %1076, %v1031
      %v1078 = vpop.permute.xlu0 %1077
      %1081 = vset.pattern.permute.xlu0 0
      %1082 = vperm.xlu0 %1081, %v1032
      %v1083 = vpop.permute.xlu0 %1082
      %1086 = vset.pattern.permute.xlu0 0
      %1087 = vperm.xlu0 %1086, %v1033
      %v1088 = vpop.permute.xlu0 %1087
      %1091 = vset.pattern.permute.xlu0 0
      %1092 = vperm.xlu0 %1091, %v1034
      %v1093 = vpop.permute.xlu0 %1092
      %1096 = vset.pattern.permute.xlu0 0
      %1097 = vperm.xlu0 %1096, %v1035
      %v1098 = vpop.permute.xlu0 %1097
      %1101 = vset.pattern.permute.xlu0 0
      %1102 = vperm.xlu0 %1101, %v1036
      %v1103 = vpop.permute.xlu0 %1102
      %1106 = vset.pattern.permute.xlu0 0
      %1107 = vperm.xlu0 %1106, %v1037
      %v1108 = vpop.permute.xlu0 %1107
      %1111 = vset.pattern.permute.xlu0 0
      %1112 = vperm.xlu0 %1111, %v1038
      %v1113 = vpop.permute.xlu0 %1112
      %1116 = vset.pattern.permute.xlu0 0
      %1117 = vperm.xlu0 %1116, %v1039
      %v1118 = vpop.permute.xlu0 %1117
      %v1120 = vsub.f32 %v199, %v1043
      %v1121 = vsub.f32 %v200, %v1048
      %v1122 = vsub.f32 %v201, %v1053
      %v1123 = vsub.f32 %v202, %v1058
      %v1124 = vsub.f32 %v203, %v1063
      %v1125 = vsub.f32 %v204, %v1068
      %v1126 = vsub.f32 %v205, %v1073
      %v1127 = vsub.f32 %v206, %v1078
      %v1128 = vsub.f32 %v207, %v1083
      %v1129 = vsub.f32 %v208, %v1088
      %v1130 = vsub.f32 %v209, %v1093
      %v1131 = vsub.f32 %v210, %v1098
      %v1132 = vsub.f32 %v211, %v1103
      %v1133 = vsub.f32 %v212, %v1108
      %v1134 = vsub.f32 %v213, %v1113
      %v1135 = vsub.f32 %v214, %v1118
      %v1136 = vmul.f32 %v1120, 1.442695
      %v1137 = vpow.pop %v1136
      %v1138 = vmul.f32 %v1121, 1.442695
      %v1139 = vpow.pop %v1138
      %v1140 = vmul.f32 %v1122, 1.442695
      %v1141 = vpow.pop %v1140
      %v1142 = vmul.f32 %v1123, 1.442695
      %v1143 = vpow.pop %v1142
      %v1144 = vmul.f32 %v1124, 1.442695
      %v1145 = vpow.pop %v1144
      %v1146 = vmul.f32 %v1125, 1.442695
      %v1147 = vpow.pop %v1146
      %v1148 = vmul.f32 %v1126, 1.442695
      %v1149 = vpow.pop %v1148
      %v1150 = vmul.f32 %v1127, 1.442695
      %v1151 = vpow.pop %v1150
      %v1152 = vmul.f32 %v1128, 1.442695
      %v1153 = vpow.pop %v1152
      %v1154 = vmul.f32 %v1129, 1.442695
      %v1155 = vpow.pop %v1154
      %v1156 = vmul.f32 %v1130, 1.442695
      %v1157 = vpow.pop %v1156
      %v1158 = vmul.f32 %v1131, 1.442695
      %v1159 = vpow.pop %v1158
      %v1160 = vmul.f32 %v1132, 1.442695
      %v1161 = vpow.pop %v1160
      %v1162 = vmul.f32 %v1133, 1.442695
      %v1163 = vpow.pop %v1162
      %v1164 = vmul.f32 %v1134, 1.442695
      %v1165 = vpow.pop %v1164
      %v1166 = vmul.f32 %v1135, 1.442695
      %v1167 = vpow.pop %v1166
      %v1168 = vld [vmem:[#allocation3] sm:$0xff]
      %v1169 = vld [vmem:[#allocation3 + $0x8] sm:$0xff]
      %v1170 = vld [vmem:[#allocation3 + $0x10] sm:$0xff]
      %v1171 = vld [vmem:[#allocation3 + $0x18] sm:$0xff]
      %v1172 = vld [vmem:[#allocation3 + $0x20] sm:$0xff]
      %v1173 = vld [vmem:[#allocation3 + $0x28] sm:$0xff]
      %v1174 = vld [vmem:[#allocation3 + $0x30] sm:$0xff]
      %v1175 = vld [vmem:[#allocation3 + $0x38] sm:$0xff]
      %v1176 = vld [vmem:[#allocation3 + $0x40] sm:$0xff]
      %v1177 = vld [vmem:[#allocation3 + $0x48] sm:$0xff]
      %v1178 = vld [vmem:[#allocation3 + $0x50] sm:$0xff]
      %v1179 = vld [vmem:[#allocation3 + $0x58] sm:$0xff]
      %v1180 = vld [vmem:[#allocation3 + $0x60] sm:$0xff]
      %v1181 = vld [vmem:[#allocation3 + $0x68] sm:$0xff]
      %v1182 = vld [vmem:[#allocation3 + $0x70] sm:$0xff]
      %v1183 = vld [vmem:[#allocation3 + $0x78] sm:$0xff]
      %v1184 = vsub.f32 %v1008, %v1024
      %v1185 = vsub.f32 %v1009, %v1025
      %v1186 = vsub.f32 %v1010, %v1026
      %v1187 = vsub.f32 %v1011, %v1027
      %v1188 = vsub.f32 %v1012, %v1028
      %v1189 = vsub.f32 %v1013, %v1029
      %v1190 = vsub.f32 %v1014, %v1030
      %v1191 = vsub.f32 %v1015, %v1031
      %v1192 = vsub.f32 %v1016, %v1032
      %v1193 = vsub.f32 %v1017, %v1033
      %v1194 = vsub.f32 %v1018, %v1034
      %v1195 = vsub.f32 %v1019, %v1035
      %v1196 = vsub.f32 %v1020, %v1036
      %v1197 = vsub.f32 %v1021, %v1037
      %v1198 = vsub.f32 %v1022, %v1038
      %v1199 = vsub.f32 %v1023, %v1039
      %v1200 = vmul.f32 %v1184, 1.442695
      %v1201 = vpow.pop %v1200
      %v1202 = vmul.f32 %v1185, 1.442695
      %v1203 = vpow.pop %v1202
      %v1204 = vmul.f32 %v1186, 1.442695
      %v1205 = vpow.pop %v1204
      %v1206 = vmul.f32 %v1187, 1.442695
      %v1207 = vpow.pop %v1206
      %v1208 = vmul.f32 %v1188, 1.442695
      %v1209 = vpow.pop %v1208
      %v1210 = vmul.f32 %v1189, 1.442695
      %v1211 = vpow.pop %v1210
      %v1212 = vmul.f32 %v1190, 1.442695
      %v1213 = vpow.pop %v1212
      %v1214 = vmul.f32 %v1191, 1.442695
      %v1215 = vpow.pop %v1214
      %v1216 = vmul.f32 %v1192, 1.442695
      %v1217 = vpow.pop %v1216
      %v1218 = vmul.f32 %v1193, 1.442695
      %v1219 = vpow.pop %v1218
      %v1220 = vmul.f32 %v1194, 1.442695
      %v1221 = vpow.pop %v1220
      %v1222 = vmul.f32 %v1195, 1.442695
      %v1223 = vpow.pop %v1222
      %v1224 = vmul.f32 %v1196, 1.442695
      %v1225 = vpow.pop %v1224
      %v1226 = vmul.f32 %v1197, 1.442695
      %v1227 = vpow.pop %v1226
      %v1228 = vmul.f32 %v1198, 1.442695
      %v1229 = vpow.pop %v1228
      %v1230 = vmul.f32 %v1199, 1.442695
      %v1231 = vpow.pop %v1230
      %v1232 = vmul.f32 %v1168, %v1201
      %v1233 = vmul.f32 %v1169, %v1203
      %v1234 = vmul.f32 %v1170, %v1205
      %v1235 = vmul.f32 %v1171, %v1207
      %v1236 = vmul.f32 %v1172, %v1209
      %v1237 = vmul.f32 %v1173, %v1211
      %v1238 = vmul.f32 %v1174, %v1213
      %v1239 = vmul.f32 %v1175, %v1215
      %v1240 = vmul.f32 %v1176, %v1217
      %v1241 = vmul.f32 %v1177, %v1219
      %v1242 = vmul.f32 %v1178, %v1221
      %v1243 = vmul.f32 %v1179, %v1223
      %v1244 = vmul.f32 %v1180, %v1225
      %v1245 = vmul.f32 %v1181, %v1227
      %v1246 = vmul.f32 %v1182, %v1229
      %v1247 = vmul.f32 %v1183, %v1231
      %1248 = vadd.xlane.f32.xlu0 %v1137
      %v1249 = vpop.xlane.xlu0 %1248
      %1250 = vadd.xlane.f32.xlu0 %v1139
      %v1251 = vpop.xlane.xlu0 %1250
      %1252 = vadd.xlane.f32.xlu0 %v1141
      %v1253 = vpop.xlane.xlu0 %1252
      %1254 = vadd.xlane.f32.xlu0 %v1143
      %v1255 = vpop.xlane.xlu0 %1254
      %1256 = vadd.xlane.f32.xlu0 %v1145
      %v1257 = vpop.xlane.xlu0 %1256
      %1258 = vadd.xlane.f32.xlu0 %v1147
      %v1259 = vpop.xlane.xlu0 %1258
      %1260 = vadd.xlane.f32.xlu0 %v1149
      %v1261 = vpop.xlane.xlu0 %1260
      %1262 = vadd.xlane.f32.xlu0 %v1151
      %v1263 = vpop.xlane.xlu0 %1262
      %1264 = vadd.xlane.f32.xlu0 %v1153
      %v1265 = vpop.xlane.xlu0 %1264
      %1266 = vadd.xlane.f32.xlu0 %v1155
      %v1267 = vpop.xlane.xlu0 %1266
      %1268 = vadd.xlane.f32.xlu0 %v1157
      %v1269 = vpop.xlane.xlu0 %1268
      %1270 = vadd.xlane.f32.xlu0 %v1159
      %v1271 = vpop.xlane.xlu0 %1270
      %1272 = vadd.xlane.f32.xlu0 %v1161
      %v1273 = vpop.xlane.xlu0 %1272
      %1274 = vadd.xlane.f32.xlu0 %v1163
      %v1275 = vpop.xlane.xlu0 %1274
      %1276 = vadd.xlane.f32.xlu0 %v1165
      %v1277 = vpop.xlane.xlu0 %1276
      %1278 = vadd.xlane.f32.xlu0 %v1167
      %v1279 = vpop.xlane.xlu0 %1278
      %v1280 = vadd.f32 %v1232, %v1249
      %v1281 = vadd.f32 %v1233, %v1251
      %v1282 = vadd.f32 %v1234, %v1253
      %v1283 = vadd.f32 %v1235, %v1255
      %v1284 = vadd.f32 %v1236, %v1257
      %v1285 = vadd.f32 %v1237, %v1259
      %v1286 = vadd.f32 %v1238, %v1261
      %v1287 = vadd.f32 %v1239, %v1263
      %v1288 = vadd.f32 %v1240, %v1265
      %v1289 = vadd.f32 %v1241, %v1267
      %v1290 = vadd.f32 %v1242, %v1269
      %v1291 = vadd.f32 %v1243, %v1271
      %v1292 = vadd.f32 %v1244, %v1273
      %v1293 = vadd.f32 %v1245, %v1275
      %v1294 = vadd.f32 %v1246, %v1277
      %v1295 = vadd.f32 %v1247, %v1279
      %vm1296 = vcmask 7168
      %1297 = vst.msk [vmem:[#allocation3] sm:$0xff] %vm1296, %v1280
      %1298 = vst.msk [vmem:[#allocation3 + $0x8] sm:$0xff] %vm1296, %v1281
      %1299 = vst.msk [vmem:[#allocation3 + $0x10] sm:$0xff] %vm1296, %v1282
      %1300 = vst.msk [vmem:[#allocation3 + $0x18] sm:$0xff] %vm1296, %v1283
      %1301 = vst.msk [vmem:[#allocation3 + $0x20] sm:$0xff] %vm1296, %v1284
      %1302 = vst.msk [vmem:[#allocation3 + $0x28] sm:$0xff] %vm1296, %v1285
      %1303 = vst.msk [vmem:[#allocation3 + $0x30] sm:$0xff] %vm1296, %v1286
      %1304 = vst.msk [vmem:[#allocation3 + $0x38] sm:$0xff] %vm1296, %v1287
      %1305 = vst.msk [vmem:[#allocation3 + $0x40] sm:$0xff] %vm1296, %v1288
      %1306 = vst.msk [vmem:[#allocation3 + $0x48] sm:$0xff] %vm1296, %v1289
      %1307 = vst.msk [vmem:[#allocation3 + $0x50] sm:$0xff] %vm1296, %v1290
      %1308 = vst.msk [vmem:[#allocation3 + $0x58] sm:$0xff] %vm1296, %v1291
      %1309 = vst.msk [vmem:[#allocation3 + $0x60] sm:$0xff] %vm1296, %v1292
      %1310 = vst.msk [vmem:[#allocation3 + $0x68] sm:$0xff] %vm1296, %v1293
      %1311 = vst.msk [vmem:[#allocation3 + $0x70] sm:$0xff] %vm1296, %v1294
      %1312 = vst.msk [vmem:[#allocation3 + $0x78] sm:$0xff] %vm1296, %v1295
      %1313 = vst.msk [vmem:[#allocation2] sm:$0xff] %vm1296, %v1024
      %1314 = vst.msk [vmem:[#allocation2 + $0x8] sm:$0xff] %vm1296, %v1025
      %1315 = vst.msk [vmem:[#allocation2 + $0x10] sm:$0xff] %vm1296, %v1026
      %1316 = vst.msk [vmem:[#allocation2 + $0x18] sm:$0xff] %vm1296, %v1027
      %1317 = vst.msk [vmem:[#allocation2 + $0x20] sm:$0xff] %vm1296, %v1028
      %1318 = vst.msk [vmem:[#allocation2 + $0x28] sm:$0xff] %vm1296, %v1029
      %1319 = vst.msk [vmem:[#allocation2 + $0x30] sm:$0xff] %vm1296, %v1030
      %1320 = vst.msk [vmem:[#allocation2 + $0x38] sm:$0xff] %vm1296, %v1031
      %1321 = vst.msk [vmem:[#allocation2 + $0x40] sm:$0xff] %vm1296, %v1032
      %1322 = vst.msk [vmem:[#allocation2 + $0x48] sm:$0xff] %vm1296, %v1033
      %1323 = vst.msk [vmem:[#allocation2 + $0x50] sm:$0xff] %vm1296, %v1034
      %1324 = vst.msk [vmem:[#allocation2 + $0x58] sm:$0xff] %vm1296, %v1035
      %1325 = vst.msk [vmem:[#allocation2 + $0x60] sm:$0xff] %vm1296, %v1036
      %1326 = vst.msk [vmem:[#allocation2 + $0x68] sm:$0xff] %vm1296, %v1037
      %1327 = vst.msk [vmem:[#allocation2 + $0x70] sm:$0xff] %vm1296, %v1038
      %1328 = vst.msk [vmem:[#allocation2 + $0x78] sm:$0xff] %vm1296, %v1039
      %v1329 = vld [vmem:[#allocation4] sm:$0xff]
      %v1330 = vld [vmem:[#allocation4 + $0x8] sm:$0xff]
      %v1331 = vld [vmem:[#allocation4 + $0x10] sm:$0xff]
      %v1332 = vld [vmem:[#allocation4 + $0x18] sm:$0xff]
      %v1333 = vld [vmem:[#allocation4 + $0x20] sm:$0xff]
      %v1334 = vld [vmem:[#allocation4 + $0x28] sm:$0xff]
      %v1335 = vld [vmem:[#allocation4 + $0x30] sm:$0xff]
      %v1336 = vld [vmem:[#allocation4 + $0x38] sm:$0xff]
      %v1337 = vld [vmem:[#allocation4 + $0x40] sm:$0xff]
      %v1338 = vld [vmem:[#allocation4 + $0x48] sm:$0xff]
      %v1339 = vld [vmem:[#allocation4 + $0x50] sm:$0xff]
      %v1340 = vld [vmem:[#allocation4 + $0x58] sm:$0xff]
      %v1341 = vld [vmem:[#allocation4 + $0x60] sm:$0xff]
      %v1342 = vld [vmem:[#allocation4 + $0x68] sm:$0xff]
      %v1343 = vld [vmem:[#allocation4 + $0x70] sm:$0xff]
      %v1344 = vld [vmem:[#allocation4 + $0x78] sm:$0xff]
      %v1345 = vsel %vm281, %v199, 0.0
      %v1346 = vsel %vm282, %v200, 0.0
      %v1347 = vsel %vm283, %v201, 0.0
      %v1348 = vsel %vm284, %v202, 0.0
      %v1349 = vsel %vm285, %v203, 0.0
      %v1350 = vsel %vm286, %v204, 0.0
      %v1351 = vsel %vm287, %v205, 0.0
      %v1352 = vsel %vm288, %v206, 0.0
      %v1353 = vsel %vm289, %v207, 0.0
      %v1354 = vsel %vm290, %v208, 0.0
      %v1355 = vsel %vm291, %v209, 0.0
      %v1356 = vsel %vm292, %v210, 0.0
      %v1357 = vsel %vm293, %v211, 0.0
      %v1358 = vsel %vm294, %v212, 0.0
      %v1359 = vsel %vm295, %v213, 0.0
      %v1360 = vsel %vm296, %v214, 0.0
      %1361 = vadd.xlane.f32.xlu0 %v1345
      %v1362 = vpop.xlane.xlu0 %1361
      %1363 = vadd.xlane.f32.xlu0 %v1346
      %v1364 = vpop.xlane.xlu0 %1363
      %1365 = vadd.xlane.f32.xlu0 %v1347
      %v1366 = vpop.xlane.xlu0 %1365
      %1367 = vadd.xlane.f32.xlu0 %v1348
      %v1368 = vpop.xlane.xlu0 %1367
      %1369 = vadd.xlane.f32.xlu0 %v1349
      %v1370 = vpop.xlane.xlu0 %1369
      %1371 = vadd.xlane.f32.xlu0 %v1350
      %v1372 = vpop.xlane.xlu0 %1371
      %1373 = vadd.xlane.f32.xlu0 %v1351
      %v1374 = vpop.xlane.xlu0 %1373
      %1375 = vadd.xlane.f32.xlu0 %v1352
      %v1376 = vpop.xlane.xlu0 %1375
      %1377 = vadd.xlane.f32.xlu0 %v1353
      %v1378 = vpop.xlane.xlu0 %1377
      %1379 = vadd.xlane.f32.xlu0 %v1354
      %v1380 = vpop.xlane.xlu0 %1379
      %1381 = vadd.xlane.f32.xlu0 %v1355
      %v1382 = vpop.xlane.xlu0 %1381
      %1383 = vadd.xlane.f32.xlu0 %v1356
      %v1384 = vpop.xlane.xlu0 %1383
      %1385 = vadd.xlane.f32.xlu0 %v1357
      %v1386 = vpop.xlane.xlu0 %1385
      %1387 = vadd.xlane.f32.xlu0 %v1358
      %v1388 = vpop.xlane.xlu0 %1387
      %1389 = vadd.xlane.f32.xlu0 %v1359
      %v1390 = vpop.xlane.xlu0 %1389
      %1391 = vadd.xlane.f32.xlu0 %v1360
      %v1392 = vpop.xlane.xlu0 %1391
      %v1393 = vadd.f32 %v1329, %v1362
      %v1394 = vadd.f32 %v1330, %v1364
      %v1395 = vadd.f32 %v1331, %v1366
      %v1396 = vadd.f32 %v1332, %v1368
      %v1397 = vadd.f32 %v1333, %v1370
      %v1398 = vadd.f32 %v1334, %v1372
      %v1399 = vadd.f32 %v1335, %v1374
      %v1400 = vadd.f32 %v1336, %v1376
      %v1401 = vadd.f32 %v1337, %v1378
      %v1402 = vadd.f32 %v1338, %v1380
      %v1403 = vadd.f32 %v1339, %v1382
      %v1404 = vadd.f32 %v1340, %v1384
      %v1405 = vadd.f32 %v1341, %v1386
      %v1406 = vadd.f32 %v1342, %v1388
      %v1407 = vadd.f32 %v1343, %v1390
      %v1408 = vadd.f32 %v1344, %v1392
      %1409 = vst.msk [vmem:[#allocation4] sm:$0xff] %vm1296, %v1393
      %1410 = vst.msk [vmem:[#allocation4 + $0x8] sm:$0xff] %vm1296, %v1394
      %1411 = vst.msk [vmem:[#allocation4 + $0x10] sm:$0xff] %vm1296, %v1395
      %1412 = vst.msk [vmem:[#allocation4 + $0x18] sm:$0xff] %vm1296, %v1396
      %1413 = vst.msk [vmem:[#allocation4 + $0x20] sm:$0xff] %vm1296, %v1397
      %1414 = vst.msk [vmem:[#allocation4 + $0x28] sm:$0xff] %vm1296, %v1398
      %1415 = vst.msk [vmem:[#allocation4 + $0x30] sm:$0xff] %vm1296, %v1399
      %1416 = vst.msk [vmem:[#allocation4 + $0x38] sm:$0xff] %vm1296, %v1400
      %1417 = vst.msk [vmem:[#allocation4 + $0x40] sm:$0xff] %vm1296, %v1401
      %1418 = vst.msk [vmem:[#allocation4 + $0x48] sm:$0xff] %vm1296, %v1402
      %1419 = vst.msk [vmem:[#allocation4 + $0x50] sm:$0xff] %vm1296, %v1403
      %1420 = vst.msk [vmem:[#allocation4 + $0x58] sm:$0xff] %vm1296, %v1404
      %1421 = vst.msk [vmem:[#allocation4 + $0x60] sm:$0xff] %vm1296, %v1405
      %1422 = vst.msk [vmem:[#allocation4 + $0x68] sm:$0xff] %vm1296, %v1406
      %1423 = vst.msk [vmem:[#allocation4 + $0x70] sm:$0xff] %vm1296, %v1407
      %1424 = vst.msk [vmem:[#allocation4 + $0x78] sm:$0xff] %vm1296, %v1408
      %v1425 = vld [vmem:[#allocation5] sm:$0xff]
      %v1426 = vld [vmem:[#allocation5 + $0x8] sm:$0xff]
      %v1427 = vld [vmem:[#allocation5 + $0x10] sm:$0xff]
      %v1428 = vld [vmem:[#allocation5 + $0x18] sm:$0xff]
      %v1429 = vld [vmem:[#allocation5 + $0x20] sm:$0xff]
      %v1430 = vld [vmem:[#allocation5 + $0x28] sm:$0xff]
      %v1431 = vld [vmem:[#allocation5 + $0x30] sm:$0xff]
      %v1432 = vld [vmem:[#allocation5 + $0x38] sm:$0xff]
      %v1433 = vld [vmem:[#allocation5 + $0x40] sm:$0xff]
      %v1434 = vld [vmem:[#allocation5 + $0x48] sm:$0xff]
      %v1435 = vld [vmem:[#allocation5 + $0x50] sm:$0xff]
      %v1436 = vld [vmem:[#allocation5 + $0x58] sm:$0xff]
      %v1437 = vld [vmem:[#allocation5 + $0x60] sm:$0xff]
      %v1438 = vld [vmem:[#allocation5 + $0x68] sm:$0xff]
      %v1439 = vld [vmem:[#allocation5 + $0x70] sm:$0xff]
      %v1440 = vld [vmem:[#allocation5 + $0x78] sm:$0xff]
      %v1441 = vsel %vm281, 1.0, 0.0
      %v1442 = vsel %vm282, 1.0, 0.0
      %v1443 = vsel %vm283, 1.0, 0.0
      %v1444 = vsel %vm284, 1.0, 0.0
      %v1445 = vsel %vm285, 1.0, 0.0
      %v1446 = vsel %vm286, 1.0, 0.0
      %v1447 = vsel %vm287, 1.0, 0.0
      %v1448 = vsel %vm288, 1.0, 0.0
      %v1449 = vsel %vm289, 1.0, 0.0
      %v1450 = vsel %vm290, 1.0, 0.0
      %v1451 = vsel %vm291, 1.0, 0.0
      %v1452 = vsel %vm292, 1.0, 0.0
      %v1453 = vsel %vm293, 1.0, 0.0
      %v1454 = vsel %vm294, 1.0, 0.0
      %v1455 = vsel %vm295, 1.0, 0.0
      %v1456 = vsel %vm296, 1.0, 0.0
      %1457 = vadd.xlane.f32.xlu0 %v1441
      %v1458 = vpop.xlane.xlu0 %1457
      %1459 = vadd.xlane.f32.xlu0 %v1442
      %v1460 = vpop.xlane.xlu0 %1459
      %1461 = vadd.xlane.f32.xlu0 %v1443
      %v1462 = vpop.xlane.xlu0 %1461
      %1463 = vadd.xlane.f32.xlu0 %v1444
      %v1464 = vpop.xlane.xlu0 %1463
      %1465 = vadd.xlane.f32.xlu0 %v1445
      %v1466 = vpop.xlane.xlu0 %1465
      %1467 = vadd.xlane.f32.xlu0 %v1446
      %v1468 = vpop.xlane.xlu0 %1467
      %1469 = vadd.xlane.f32.xlu0 %v1447
      %v1470 = vpop.xlane.xlu0 %1469
      %1471 = vadd.xlane.f32.xlu0 %v1448
      %v1472 = vpop.xlane.xlu0 %1471
      %1473 = vadd.xlane.f32.xlu0 %v1449
      %v1474 = vpop.xlane.xlu0 %1473
      %1475 = vadd.xlane.f32.xlu0 %v1450
      %v1476 = vpop.xlane.xlu0 %1475
      %1477 = vadd.xlane.f32.xlu0 %v1451
      %v1478 = vpop.xlane.xlu0 %1477
      %1479 = vadd.xlane.f32.xlu0 %v1452
      %v1480 = vpop.xlane.xlu0 %1479
      %1481 = vadd.xlane.f32.xlu0 %v1453
      %v1482 = vpop.xlane.xlu0 %1481
      %1483 = vadd.xlane.f32.xlu0 %v1454
      %v1484 = vpop.xlane.xlu0 %1483
      %1485 = vadd.xlane.f32.xlu0 %v1455
      %v1486 = vpop.xlane.xlu0 %1485
      %1487 = vadd.xlane.f32.xlu0 %v1456
      %v1488 = vpop.xlane.xlu0 %1487
      %v1489 = vadd.f32 %v1425, %v1458
      %v1490 = vadd.f32 %v1426, %v1460
      %v1491 = vadd.f32 %v1427, %v1462
      %v1492 = vadd.f32 %v1428, %v1464
      %v1493 = vadd.f32 %v1429, %v1466
      %v1494 = vadd.f32 %v1430, %v1468
      %v1495 = vadd.f32 %v1431, %v1470
      %v1496 = vadd.f32 %v1432, %v1472
      %v1497 = vadd.f32 %v1433, %v1474
      %v1498 = vadd.f32 %v1434, %v1476
      %v1499 = vadd.f32 %v1435, %v1478
      %v1500 = vadd.f32 %v1436, %v1480
      %v1501 = vadd.f32 %v1437, %v1482
      %v1502 = vadd.f32 %v1438, %v1484
      %v1503 = vadd.f32 %v1439, %v1486
      %v1504 = vadd.f32 %v1440, %v1488
      %1505 = vst.msk [vmem:[#allocation5] sm:$0xff] %vm1296, %v1489
      %1506 = vst.msk [vmem:[#allocation5 + $0x8] sm:$0xff] %vm1296, %v1490
      %1507 = vst.msk [vmem:[#allocation5 + $0x10] sm:$0xff] %vm1296, %v1491
      %1508 = vst.msk [vmem:[#allocation5 + $0x18] sm:$0xff] %vm1296, %v1492
      %1509 = vst.msk [vmem:[#allocation5 + $0x20] sm:$0xff] %vm1296, %v1493
      %1510 = vst.msk [vmem:[#allocation5 + $0x28] sm:$0xff] %vm1296, %v1494
      %1511 = vst.msk [vmem:[#allocation5 + $0x30] sm:$0xff] %vm1296, %v1495
      %1512 = vst.msk [vmem:[#allocation5 + $0x38] sm:$0xff] %vm1296, %v1496
      %1513 = vst.msk [vmem:[#allocation5 + $0x40] sm:$0xff] %vm1296, %v1497
      %1514 = vst.msk [vmem:[#allocation5 + $0x48] sm:$0xff] %vm1296, %v1498
      %1515 = vst.msk [vmem:[#allocation5 + $0x50] sm:$0xff] %vm1296, %v1499
      %1516 = vst.msk [vmem:[#allocation5 + $0x58] sm:$0xff] %vm1296, %v1500
      %1517 = vst.msk [vmem:[#allocation5 + $0x60] sm:$0xff] %vm1296, %v1501
      %1518 = vst.msk [vmem:[#allocation5 + $0x68] sm:$0xff] %vm1296, %v1502
      %1519 = vst.msk [vmem:[#allocation5 + $0x70] sm:$0xff] %vm1296, %v1503
      %1520 = vst.msk [vmem:[#allocation5 + $0x78] sm:$0xff] %vm1296, %v1504
    $region33: #{tpu_custom_call.1} parent=1 // pred_fallthru
      _
    // Predicated region
    $region34: #{tpu_custom_call.1} parent=1 // pred_check
      %p1521 = pneg %p33
    $region35: #{tpu_custom_call.1} parent=1 // pred_check_branch
      %1523 = sbr.rel (%p1521) target = $region37
    $region36: #{tpu_custom_call.1} parent=1 // pred_region
      %v1524 = vld [vmem:[#allocation5] sm:$0xff]
      %v1525 = vld [vmem:[#allocation5 + $0x8] sm:$0xff]
      %v1526 = vld [vmem:[#allocation5 + $0x10] sm:$0xff]
      %v1527 = vld [vmem:[#allocation5 + $0x18] sm:$0xff]
      %v1528 = vld [vmem:[#allocation5 + $0x20] sm:$0xff]
      %v1529 = vld [vmem:[#allocation5 + $0x28] sm:$0xff]
      %v1530 = vld [vmem:[#allocation5 + $0x30] sm:$0xff]
      %v1531 = vld [vmem:[#allocation5 + $0x38] sm:$0xff]
      %v1532 = vld [vmem:[#allocation5 + $0x40] sm:$0xff]
      %v1533 = vld [vmem:[#allocation5 + $0x48] sm:$0xff]
      %v1534 = vld [vmem:[#allocation5 + $0x50] sm:$0xff]
      %v1535 = vld [vmem:[#allocation5 + $0x58] sm:$0xff]
      %v1536 = vld [vmem:[#allocation5 + $0x60] sm:$0xff]
      %v1537 = vld [vmem:[#allocation5 + $0x68] sm:$0xff]
      %v1538 = vld [vmem:[#allocation5 + $0x70] sm:$0xff]
      %v1539 = vld [vmem:[#allocation5 + $0x78] sm:$0xff]
      %v1540 = vrcp.pop %v1524
      %v1541 = vmul.f32 %v1524, %v1540
      %v1542 = vsub.f32 1.0, %v1541
      %v1543 = vmul.f32 %v1540, %v1542
      %v1544 = vadd.f32 %v1540, %v1543
      %vm1545 = vweird.f32 %v1524
      %vm1546 = vweird.f32 %v1540
      %vm1547 = vmor %vm1545, %vm1546
      %v1548 = vsel %vm1547, %v1540, %v1544
      %v1549 = vand.u32 2147483647, %v1524
      %vm1550 = vcmp.eq.f32.partialorder %v1549, 8.507059e+37
      %v1551 = vand.u32 %v1524, 2147483648
      %v1552 = vor.u32 1.1754944e-38, %v1551
      %v1553 = vsel %vm1550, %v1552, %v1548
      %v1554 = vrcp.pop %v1525
      %v1555 = vmul.f32 %v1525, %v1554
      %v1556 = vsub.f32 1.0, %v1555
      %v1557 = vmul.f32 %v1554, %v1556
      %v1558 = vadd.f32 %v1554, %v1557
      %vm1559 = vweird.f32 %v1525
      %vm1560 = vweird.f32 %v1554
      %vm1561 = vmor %vm1559, %vm1560
      %v1562 = vsel %vm1561, %v1554, %v1558
      %v1563 = vand.u32 2147483647, %v1525
      %vm1564 = vcmp.eq.f32.partialorder %v1563, 8.507059e+37
      %v1565 = vand.u32 %v1525, 2147483648
      %v1566 = vor.u32 1.1754944e-38, %v1565
      %v1567 = vsel %vm1564, %v1566, %v1562
      %v1568 = vrcp.pop %v1526
      %v1569 = vmul.f32 %v1526, %v1568
      %v1570 = vsub.f32 1.0, %v1569
      %v1571 = vmul.f32 %v1568, %v1570
      %v1572 = vadd.f32 %v1568, %v1571
      %vm1573 = vweird.f32 %v1526
      %vm1574 = vweird.f32 %v1568
      %vm1575 = vmor %vm1573, %vm1574
      %v1576 = vsel %vm1575, %v1568, %v1572
      %v1577 = vand.u32 2147483647, %v1526
      %vm1578 = vcmp.eq.f32.partialorder %v1577, 8.507059e+37
      %v1579 = vand.u32 %v1526, 2147483648
      %v1580 = vor.u32 1.1754944e-38, %v1579
      %v1581 = vsel %vm1578, %v1580, %v1576
      %v1582 = vrcp.pop %v1527
      %v1583 = vmul.f32 %v1527, %v1582
      %v1584 = vsub.f32 1.0, %v1583
      %v1585 = vmul.f32 %v1582, %v1584
      %v1586 = vadd.f32 %v1582, %v1585
      %vm1587 = vweird.f32 %v1527
      %vm1588 = vweird.f32 %v1582
      %vm1589 = vmor %vm1587, %vm1588
      %v1590 = vsel %vm1589, %v1582, %v1586
      %v1591 = vand.u32 2147483647, %v1527
      %vm1592 = vcmp.eq.f32.partialorder %v1591, 8.507059e+37
      %v1593 = vand.u32 %v1527, 2147483648
      %v1594 = vor.u32 1.1754944e-38, %v1593
      %v1595 = vsel %vm1592, %v1594, %v1590
      %v1596 = vrcp.pop %v1528
      %v1597 = vmul.f32 %v1528, %v1596
      %v1598 = vsub.f32 1.0, %v1597
      %v1599 = vmul.f32 %v1596, %v1598
      %v1600 = vadd.f32 %v1596, %v1599
      %vm1601 = vweird.f32 %v1528
      %vm1602 = vweird.f32 %v1596
      %vm1603 = vmor %vm1601, %vm1602
      %v1604 = vsel %vm1603, %v1596, %v1600
      %v1605 = vand.u32 2147483647, %v1528
      %vm1606 = vcmp.eq.f32.partialorder %v1605, 8.507059e+37
      %v1607 = vand.u32 %v1528, 2147483648
      %v1608 = vor.u32 1.1754944e-38, %v1607
      %v1609 = vsel %vm1606, %v1608, %v1604
      %v1610 = vrcp.pop %v1529
      %v1611 = vmul.f32 %v1529, %v1610
      %v1612 = vsub.f32 1.0, %v1611
      %v1613 = vmul.f32 %v1610, %v1612
      %v1614 = vadd.f32 %v1610, %v1613
      %vm1615 = vweird.f32 %v1529
      %vm1616 = vweird.f32 %v1610
      %vm1617 = vmor %vm1615, %vm1616
      %v1618 = vsel %vm1617, %v1610, %v1614
      %v1619 = vand.u32 2147483647, %v1529
      %vm1620 = vcmp.eq.f32.partialorder %v1619, 8.507059e+37
      %v1621 = vand.u32 %v1529, 2147483648
      %v1622 = vor.u32 1.1754944e-38, %v1621
      %v1623 = vsel %vm1620, %v1622, %v1618
      %v1624 = vrcp.pop %v1530
      %v1625 = vmul.f32 %v1530, %v1624
      %v1626 = vsub.f32 1.0, %v1625
      %v1627 = vmul.f32 %v1624, %v1626
      %v1628 = vadd.f32 %v1624, %v1627
      %vm1629 = vweird.f32 %v1530
      %vm1630 = vweird.f32 %v1624
      %vm1631 = vmor %vm1629, %vm1630
      %v1632 = vsel %vm1631, %v1624, %v1628
      %v1633 = vand.u32 2147483647, %v1530
      %vm1634 = vcmp.eq.f32.partialorder %v1633, 8.507059e+37
      %v1635 = vand.u32 %v1530, 2147483648
      %v1636 = vor.u32 1.1754944e-38, %v1635
      %v1637 = vsel %vm1634, %v1636, %v1632
      %v1638 = vrcp.pop %v1531
      %v1639 = vmul.f32 %v1531, %v1638
      %v1640 = vsub.f32 1.0, %v1639
      %v1641 = vmul.f32 %v1638, %v1640
      %v1642 = vadd.f32 %v1638, %v1641
      %vm1643 = vweird.f32 %v1531
      %vm1644 = vweird.f32 %v1638
      %vm1645 = vmor %vm1643, %vm1644
      %v1646 = vsel %vm1645, %v1638, %v1642
      %v1647 = vand.u32 2147483647, %v1531
      %vm1648 = vcmp.eq.f32.partialorder %v1647, 8.507059e+37
      %v1649 = vand.u32 %v1531, 2147483648
      %v1650 = vor.u32 1.1754944e-38, %v1649
      %v1651 = vsel %vm1648, %v1650, %v1646
      %v1652 = vrcp.pop %v1532
      %v1653 = vmul.f32 %v1532, %v1652
      %v1654 = vsub.f32 1.0, %v1653
      %v1655 = vmul.f32 %v1652, %v1654
      %v1656 = vadd.f32 %v1652, %v1655
      %vm1657 = vweird.f32 %v1532
      %vm1658 = vweird.f32 %v1652
      %vm1659 = vmor %vm1657, %vm1658
      %v1660 = vsel %vm1659, %v1652, %v1656
      %v1661 = vand.u32 2147483647, %v1532
      %vm1662 = vcmp.eq.f32.partialorder %v1661, 8.507059e+37
      %v1663 = vand.u32 %v1532, 2147483648
      %v1664 = vor.u32 1.1754944e-38, %v1663
      %v1665 = vsel %vm1662, %v1664, %v1660
      %v1666 = vrcp.pop %v1533
      %v1667 = vmul.f32 %v1533, %v1666
      %v1668 = vsub.f32 1.0, %v1667
      %v1669 = vmul.f32 %v1666, %v1668
      %v1670 = vadd.f32 %v1666, %v1669
      %vm1671 = vweird.f32 %v1533
      %vm1672 = vweird.f32 %v1666
      %vm1673 = vmor %vm1671, %vm1672
      %v1674 = vsel %vm1673, %v1666, %v1670
      %v1675 = vand.u32 2147483647, %v1533
      %vm1676 = vcmp.eq.f32.partialorder %v1675, 8.507059e+37
      %v1677 = vand.u32 %v1533, 2147483648
      %v1678 = vor.u32 1.1754944e-38, %v1677
      %v1679 = vsel %vm1676, %v1678, %v1674
      %v1680 = vrcp.pop %v1534
      %v1681 = vmul.f32 %v1534, %v1680
      %v1682 = vsub.f32 1.0, %v1681
      %v1683 = vmul.f32 %v1680, %v1682
      %v1684 = vadd.f32 %v1680, %v1683
      %vm1685 = vweird.f32 %v1534
      %vm1686 = vweird.f32 %v1680
      %vm1687 = vmor %vm1685, %vm1686
      %v1688 = vsel %vm1687, %v1680, %v1684
      %v1689 = vand.u32 2147483647, %v1534
      %vm1690 = vcmp.eq.f32.partialorder %v1689, 8.507059e+37
      %v1691 = vand.u32 %v1534, 2147483648
      %v1692 = vor.u32 1.1754944e-38, %v1691
      %v1693 = vsel %vm1690, %v1692, %v1688
      %v1694 = vrcp.pop %v1535
      %v1695 = vmul.f32 %v1535, %v1694
      %v1696 = vsub.f32 1.0, %v1695
      %v1697 = vmul.f32 %v1694, %v1696
      %v1698 = vadd.f32 %v1694, %v1697
      %vm1699 = vweird.f32 %v1535
      %vm1700 = vweird.f32 %v1694
      %vm1701 = vmor %vm1699, %vm1700
      %v1702 = vsel %vm1701, %v1694, %v1698
      %v1703 = vand.u32 2147483647, %v1535
      %vm1704 = vcmp.eq.f32.partialorder %v1703, 8.507059e+37
      %v1705 = vand.u32 %v1535, 2147483648
      %v1706 = vor.u32 1.1754944e-38, %v1705
      %v1707 = vsel %vm1704, %v1706, %v1702
      %v1708 = vrcp.pop %v1536
      %v1709 = vmul.f32 %v1536, %v1708
      %v1710 = vsub.f32 1.0, %v1709
      %v1711 = vmul.f32 %v1708, %v1710
      %v1712 = vadd.f32 %v1708, %v1711
      %vm1713 = vweird.f32 %v1536
      %vm1714 = vweird.f32 %v1708
      %vm1715 = vmor %vm1713, %vm1714
      %v1716 = vsel %vm1715, %v1708, %v1712
      %v1717 = vand.u32 2147483647, %v1536
      %vm1718 = vcmp.eq.f32.partialorder %v1717, 8.507059e+37
      %v1719 = vand.u32 %v1536, 2147483648
      %v1720 = vor.u32 1.1754944e-38, %v1719
      %v1721 = vsel %vm1718, %v1720, %v1716
      %v1722 = vrcp.pop %v1537
      %v1723 = vmul.f32 %v1537, %v1722
      %v1724 = vsub.f32 1.0, %v1723
      %v1725 = vmul.f32 %v1722, %v1724
      %v1726 = vadd.f32 %v1722, %v1725
      %vm1727 = vweird.f32 %v1537
      %vm1728 = vweird.f32 %v1722
      %vm1729 = vmor %vm1727, %vm1728
      %v1730 = vsel %vm1729, %v1722, %v1726
      %v1731 = vand.u32 2147483647, %v1537
      %vm1732 = vcmp.eq.f32.partialorder %v1731, 8.507059e+37
      %v1733 = vand.u32 %v1537, 2147483648
      %v1734 = vor.u32 1.1754944e-38, %v1733
      %v1735 = vsel %vm1732, %v1734, %v1730
      %v1736 = vrcp.pop %v1538
      %v1737 = vmul.f32 %v1538, %v1736
      %v1738 = vsub.f32 1.0, %v1737
      %v1739 = vmul.f32 %v1736, %v1738
      %v1740 = vadd.f32 %v1736, %v1739
      %vm1741 = vweird.f32 %v1538
      %vm1742 = vweird.f32 %v1736
      %vm1743 = vmor %vm1741, %vm1742
      %v1744 = vsel %vm1743, %v1736, %v1740
      %v1745 = vand.u32 2147483647, %v1538
      %vm1746 = vcmp.eq.f32.partialorder %v1745, 8.507059e+37
      %v1747 = vand.u32 %v1538, 2147483648
      %v1748 = vor.u32 1.1754944e-38, %v1747
      %v1749 = vsel %vm1746, %v1748, %v1744
      %v1750 = vrcp.pop %v1539
      %v1751 = vmul.f32 %v1539, %v1750
      %v1752 = vsub.f32 1.0, %v1751
      %v1753 = vmul.f32 %v1750, %v1752
      %v1754 = vadd.f32 %v1750, %v1753
      %vm1755 = vweird.f32 %v1539
      %vm1756 = vweird.f32 %v1750
      %vm1757 = vmor %vm1755, %vm1756
      %v1758 = vsel %vm1757, %v1750, %v1754
      %v1759 = vand.u32 2147483647, %v1539
      %vm1760 = vcmp.eq.f32.partialorder %v1759, 8.507059e+37
      %v1761 = vand.u32 %v1539, 2147483648
      %v1762 = vor.u32 1.1754944e-38, %v1761
      %v1763 = vsel %vm1760, %v1762, %v1758
      %v1764 = vld [vmem:[#allocation4] sm:$0xff]
      %v1765 = vld [vmem:[#allocation4 + $0x8] sm:$0xff]
      %v1766 = vld [vmem:[#allocation4 + $0x10] sm:$0xff]
      %v1767 = vld [vmem:[#allocation4 + $0x18] sm:$0xff]
      %v1768 = vld [vmem:[#allocation4 + $0x20] sm:$0xff]
      %v1769 = vld [vmem:[#allocation4 + $0x28] sm:$0xff]
      %v1770 = vld [vmem:[#allocation4 + $0x30] sm:$0xff]
      %v1771 = vld [vmem:[#allocation4 + $0x38] sm:$0xff]
      %v1772 = vld [vmem:[#allocation4 + $0x40] sm:$0xff]
      %v1773 = vld [vmem:[#allocation4 + $0x48] sm:$0xff]
      %v1774 = vld [vmem:[#allocation4 + $0x50] sm:$0xff]
      %v1775 = vld [vmem:[#allocation4 + $0x58] sm:$0xff]
      %v1776 = vld [vmem:[#allocation4 + $0x60] sm:$0xff]
      %v1777 = vld [vmem:[#allocation4 + $0x68] sm:$0xff]
      %v1778 = vld [vmem:[#allocation4 + $0x70] sm:$0xff]
      %v1779 = vld [vmem:[#allocation4 + $0x78] sm:$0xff]
      %v1780 = vmul.f32 %v1764, %v1553
      %v1781 = vmul.f32 %v1765, %v1567
      %v1782 = vmul.f32 %v1766, %v1581
      %v1783 = vmul.f32 %v1767, %v1595
      %v1784 = vmul.f32 %v1768, %v1609
      %v1785 = vmul.f32 %v1769, %v1623
      %v1786 = vmul.f32 %v1770, %v1637
      %v1787 = vmul.f32 %v1771, %v1651
      %v1788 = vmul.f32 %v1772, %v1665
      %v1789 = vmul.f32 %v1773, %v1679
      %v1790 = vmul.f32 %v1774, %v1693
      %v1791 = vmul.f32 %v1775, %v1707
      %v1792 = vmul.f32 %v1776, %v1721
      %v1793 = vmul.f32 %v1777, %v1735
      %v1794 = vmul.f32 %v1778, %v1749
      %v1795 = vmul.f32 %v1779, %v1763
      %v1796 = vld [vmem:[#allocation2] sm:$0xff]
      %v1797 = vld [vmem:[#allocation2 + $0x8] sm:$0xff]
      %v1798 = vld [vmem:[#allocation2 + $0x10] sm:$0xff]
      %v1799 = vld [vmem:[#allocation2 + $0x18] sm:$0xff]
      %v1800 = vld [vmem:[#allocation2 + $0x20] sm:$0xff]
      %v1801 = vld [vmem:[#allocation2 + $0x28] sm:$0xff]
      %v1802 = vld [vmem:[#allocation2 + $0x30] sm:$0xff]
      %v1803 = vld [vmem:[#allocation2 + $0x38] sm:$0xff]
      %v1804 = vld [vmem:[#allocation2 + $0x40] sm:$0xff]
      %v1805 = vld [vmem:[#allocation2 + $0x48] sm:$0xff]
      %v1806 = vld [vmem:[#allocation2 + $0x50] sm:$0xff]
      %v1807 = vld [vmem:[#allocation2 + $0x58] sm:$0xff]
      %v1808 = vld [vmem:[#allocation2 + $0x60] sm:$0xff]
      %v1809 = vld [vmem:[#allocation2 + $0x68] sm:$0xff]
      %v1810 = vld [vmem:[#allocation2 + $0x70] sm:$0xff]
      %v1811 = vld [vmem:[#allocation2 + $0x78] sm:$0xff]
      %v1812 = vsub.f32 %v1780, %v1796
      %v1813 = vsub.f32 %v1781, %v1797
      %v1814 = vsub.f32 %v1782, %v1798
      %v1815 = vsub.f32 %v1783, %v1799
      %v1816 = vsub.f32 %v1784, %v1800
      %v1817 = vsub.f32 %v1785, %v1801
      %v1818 = vsub.f32 %v1786, %v1802
      %v1819 = vsub.f32 %v1787, %v1803
      %v1820 = vsub.f32 %v1788, %v1804
      %v1821 = vsub.f32 %v1789, %v1805
      %v1822 = vsub.f32 %v1790, %v1806
      %v1823 = vsub.f32 %v1791, %v1807
      %v1824 = vsub.f32 %v1792, %v1808
      %v1825 = vsub.f32 %v1793, %v1809
      %v1826 = vsub.f32 %v1794, %v1810
      %v1827 = vsub.f32 %v1795, %v1811
      %v1828 = vld [vmem:[#allocation3] sm:$0xff]
      %v1829 = vld [vmem:[#allocation3 + $0x8] sm:$0xff]
      %v1830 = vld [vmem:[#allocation3 + $0x10] sm:$0xff]
      %v1831 = vld [vmem:[#allocation3 + $0x18] sm:$0xff]
      %v1832 = vld [vmem:[#allocation3 + $0x20] sm:$0xff]
      %v1833 = vld [vmem:[#allocation3 + $0x28] sm:$0xff]
      %v1834 = vld [vmem:[#allocation3 + $0x30] sm:$0xff]
      %v1835 = vld [vmem:[#allocation3 + $0x38] sm:$0xff]
      %v1836 = vld [vmem:[#allocation3 + $0x40] sm:$0xff]
      %v1837 = vld [vmem:[#allocation3 + $0x48] sm:$0xff]
      %v1838 = vld [vmem:[#allocation3 + $0x50] sm:$0xff]
      %v1839 = vld [vmem:[#allocation3 + $0x58] sm:$0xff]
      %v1840 = vld [vmem:[#allocation3 + $0x60] sm:$0xff]
      %v1841 = vld [vmem:[#allocation3 + $0x68] sm:$0xff]
      %v1842 = vld [vmem:[#allocation3 + $0x70] sm:$0xff]
      %v1843 = vld [vmem:[#allocation3 + $0x78] sm:$0xff]
      %v1844 = vlog2.pop %v1828
      %v1845 = vmul.f32 %v1844, 0.6931472
      %v1846 = vlog2.pop %v1829
      %v1847 = vmul.f32 %v1846, 0.6931472
      %v1848 = vlog2.pop %v1830
      %v1849 = vmul.f32 %v1848, 0.6931472
      %v1850 = vlog2.pop %v1831
      %v1851 = vmul.f32 %v1850, 0.6931472
      %v1852 = vlog2.pop %v1832
      %v1853 = vmul.f32 %v1852, 0.6931472
      %v1854 = vlog2.pop %v1833
      %v1855 = vmul.f32 %v1854, 0.6931472
      %v1856 = vlog2.pop %v1834
      %v1857 = vmul.f32 %v1856, 0.6931472
      %v1858 = vlog2.pop %v1835
      %v1859 = vmul.f32 %v1858, 0.6931472
      %v1860 = vlog2.pop %v1836
      %v1861 = vmul.f32 %v1860, 0.6931472
      %v1862 = vlog2.pop %v1837
      %v1863 = vmul.f32 %v1862, 0.6931472
      %v1864 = vlog2.pop %v1838
      %v1865 = vmul.f32 %v1864, 0.6931472
      %v1866 = vlog2.pop %v1839
      %v1867 = vmul.f32 %v1866, 0.6931472
      %v1868 = vlog2.pop %v1840
      %v1869 = vmul.f32 %v1868, 0.6931472
      %v1870 = vlog2.pop %v1841
      %v1871 = vmul.f32 %v1870, 0.6931472
      %v1872 = vlog2.pop %v1842
      %v1873 = vmul.f32 %v1872, 0.6931472
      %v1874 = vlog2.pop %v1843
      %v1875 = vmul.f32 %v1874, 0.6931472
      %v1876 = vsub.f32 %v1812, %v1845
      %v1877 = vsub.f32 %v1813, %v1847
      %v1878 = vsub.f32 %v1814, %v1849
      %v1879 = vsub.f32 %v1815, %v1851
      %v1880 = vsub.f32 %v1816, %v1853
      %v1881 = vsub.f32 %v1817, %v1855
      %v1882 = vsub.f32 %v1818, %v1857
      %v1883 = vsub.f32 %v1819, %v1859
      %v1884 = vsub.f32 %v1820, %v1861
      %v1885 = vsub.f32 %v1821, %v1863
      %v1886 = vsub.f32 %v1822, %v1865
      %v1887 = vsub.f32 %v1823, %v1867
      %v1888 = vsub.f32 %v1824, %v1869
      %v1889 = vsub.f32 %v1825, %v1871
      %v1890 = vsub.f32 %v1826, %v1873
      %v1891 = vsub.f32 %v1827, %v1875
      %v1892 = vmul.f32 %v1876, -1.0
      %v1893 = vmul.f32 %v1877, -1.0
      %v1894 = vmul.f32 %v1878, -1.0
      %v1895 = vmul.f32 %v1879, -1.0
      %v1896 = vmul.f32 %v1880, -1.0
      %v1897 = vmul.f32 %v1881, -1.0
      %v1898 = vmul.f32 %v1882, -1.0
      %v1899 = vmul.f32 %v1883, -1.0
      %v1900 = vmul.f32 %v1884, -1.0
      %v1901 = vmul.f32 %v1885, -1.0
      %v1902 = vmul.f32 %v1886, -1.0
      %v1903 = vmul.f32 %v1887, -1.0
      %v1904 = vmul.f32 %v1888, -1.0
      %v1905 = vmul.f32 %v1889, -1.0
      %v1906 = vmul.f32 %v1890, -1.0
      %v1907 = vmul.f32 %v1891, -1.0
      %vm1908 = vcmask 7168
      %1909 = vst.msk [vmem:[%s4] sm:$0xff] %vm1908, %v1892
      %1910 = vst.msk [vmem:[%s4 + $0x8] sm:$0xff] %vm1908, %v1893
      %1911 = vst.msk [vmem:[%s4 + $0x10] sm:$0xff] %vm1908, %v1894
      %1912 = vst.msk [vmem:[%s4 + $0x18] sm:$0xff] %vm1908, %v1895
      %1913 = vst.msk [vmem:[%s4 + $0x20] sm:$0xff] %vm1908, %v1896
      %1914 = vst.msk [vmem:[%s4 + $0x28] sm:$0xff] %vm1908, %v1897
      %1915 = vst.msk [vmem:[%s4 + $0x30] sm:$0xff] %vm1908, %v1898
      %1916 = vst.msk [vmem:[%s4 + $0x38] sm:$0xff] %vm1908, %v1899
      %1917 = vst.msk [vmem:[%s4 + $0x40] sm:$0xff] %vm1908, %v1900
      %1918 = vst.msk [vmem:[%s4 + $0x48] sm:$0xff] %vm1908, %v1901
      %1919 = vst.msk [vmem:[%s4 + $0x50] sm:$0xff] %vm1908, %v1902
      %1920 = vst.msk [vmem:[%s4 + $0x58] sm:$0xff] %vm1908, %v1903
      %1921 = vst.msk [vmem:[%s4 + $0x60] sm:$0xff] %vm1908, %v1904
      %1922 = vst.msk [vmem:[%s4 + $0x68] sm:$0xff] %vm1908, %v1905
      %1923 = vst.msk [vmem:[%s4 + $0x70] sm:$0xff] %vm1908, %v1906
      %1924 = vst.msk [vmem:[%s4 + $0x78] sm:$0xff] %vm1908, %v1907
    $region37: #{tpu_custom_call.1} parent=1 // pred_fallthru
      _
    // Predicated region
    $region38: #{tpu_custom_call.1} parent=1 // pred_check
      _
    $region39: #{tpu_custom_call.1} parent=1 // pred_check_branch
      %1926 = sbr.rel (0) target = $region41
    $region40: #{tpu_custom_call.1} parent=1 // pred_region
      _
    $region41: #{tpu_custom_call.1} parent=1 // pred_fallthru
      _
    // Predicated region
    $region42: #{tpu_custom_call.1} parent=1 // pred_check
      _
    $region43: #{tpu_custom_call.1} parent=1 // pred_check_branch
      %1928 = sbr.rel (0) target = $region45
    $region44: #{tpu_custom_call.1} parent=1 // pred_region
      _
    $region45: #{tpu_custom_call.1} parent=1 // pred_fallthru
      _
    %1929 = vsyncpa [#allocation7], 1

</llo_original>
